<compile_context>
chip_gen: v7x
topology: tpu7x:2x2x1
jax: 0.10.0
libtpu: 0.0.40
codegen_flags: <defaults>
</compile_context>

<pallas_src>
import functools

import jax
import jax.numpy as jnp
from jax.experimental import pallas as pl
from jax.experimental.pallas import tpu as pltpu

EMB_DIM = 32
NODE_FEAT_DIM = 6
LATENT_DIM = 32
NUM_LAYERS = 4

E_PAD = 128    # embedding dim padded to full lane width
HEAD_W = 128   # fused head output slab width: [mu | log_var | prop | zeros]


def _round_up(x, m):
    return (x + m - 1) // m * m


def _pad_to(a, shape):
    pads = [(0, t - s) for s, t in zip(a.shape, shape)]
    return jnp.pad(a, pads)


# ----------------------------------------------------------------------------
# Pallas kernel: GCN layers + pooling + heads, tiled over (layer, row, k).
# ----------------------------------------------------------------------------
def graph_encoder_kernel(
    h0_ref,       # [N_pad, E_PAD] f32   H0 = X @ W_in + b_in (hoisted to XLA)
    pool_ref,     # [B_pad, T]     f32   mean-pool weights for row-tile i
    adj_ref,      # streamed: [T, T] | resident: [n_blk, N_pad, T]  (adj dtype)
    wc_ref,       # [1, E_PAD, E_PAD] f32  GCN weight of current layer
    bc_ref,       # [1, 1, E_PAD]     f32  GCN bias of current layer
    w_head_ref,   # [E_PAD, HEAD_W]   f32  fused (mu | log_var), zero padded
    b_head_ref,   # [1, HEAD_W]       f32
    w_p1_ref,     # [HEAD_W, E_PAD]   f32  property MLP layer-1 (rows >= Z zero)
    b_p1_ref,     # [1, E_PAD]        f32
    w_p2_ref,     # [1, E_PAD]        f32  property MLP layer-2 weight as a row
    b_p2_ref,     # [1, 1]            f32  (SMEM scalar)
    out_ref,      # [B_pad, HEAD_W]   f32  lane-dense output slab
    h_ref,        # scratch VMEM [N_pad, E_PAD] f32   node embeddings (resident)
    hw_ref,       # scratch VMEM [N_pad, E_PAD] adj dtype   H @ W_l snapshot
    acc_ref,      # scratch VMEM [T, E_PAD] f32       row-tile accumulator
    pooled_ref,   # scratch VMEM [B_pad, E_PAD] f32   pooled graph embeddings
    *,
    adj_resident: bool,
):
    f32 = jnp.float32
    l = pl.program_id(0)
    i = pl.program_id(1)
    k = pl.program_id(2)
    nl = pl.num_programs(0)
    ni = pl.num_programs(1)
    nk = pl.num_programs(2)
    tile = acc_ref.shape[0]
    i_off = pl.multiple_of(i * tile, tile)
    k_off = pl.multiple_of(k * tile, tile)

    # ---- per-layer prologue (once, at i == 0 and k == 0) ---------------------
    @pl.when((i == 0) & (k == 0))
    def _layer_prologue():
        @pl.when(l == 0)
        def _init_h():
            h_ref[...] = h0_ref[...]

        # Snapshot HW = H @ W_l once per layer (H rows are overwritten below).
        hw_ref[...] = jnp.dot(
            h_ref[...], wc_ref[0], preferred_element_type=f32
        ).astype(hw_ref.dtype)

        @pl.when(l == nl - 1)
        def _init_pooled():
            pooled_ref[...] = jnp.zeros_like(pooled_ref)

    # ---- tiled adjacency matmul: acc += A[i, k] @ HW[k] ----------------------
    @pl.when(k == 0)
    def _init_acc():
        acc_ref[...] = jnp.zeros_like(acc_ref)

    if adj_resident:
        # adj_ref[k, r, c] == A_hat[r, k*tile + c]; fetched once, VMEM-resident.
        a_tile = adj_ref[k, pl.ds(i_off, tile), :]
    else:
        a_tile = adj_ref[...]

    acc_ref[...] += jnp.dot(
        a_tile, hw_ref[pl.ds(k_off, tile), :], preferred_element_type=f32
    )

    # ---- row-tile finalize: H[i-tile] = acc + b_l ----------------------------
    @pl.when(k == nk - 1)
    def _finalize_rows():
        h_new = acc_ref[...] + bc_ref[0]
        h_ref[pl.ds(i_off, tile), :] = h_new

        # Incremental global_mean_pool during the last layer.
        @pl.when(l == nl - 1)
        def _pool_update():
            pooled_ref[...] += jnp.dot(
                pool_ref[...], h_new, preferred_element_type=f32
            )

    # ---- epilogue: fused heads, once at the very last grid point -------------
    @pl.when((l == nl - 1) & (i == ni - 1) & (k == nk - 1))
    def _epilogue():
        h_graph = pooled_ref[...]

        # Fused mu | log_var head, lane-dense 128-wide result.
        head = (
            jnp.dot(h_graph, w_head_ref[...], preferred_element_type=f32)
            + b_head_ref[...]
        )

        # property_predictor(mu): Linear -> ReLU -> (VPU reduction) Linear.
        # w_p1 rows >= LATENT_DIM are zero, so log_var columns contribute 0.
        p1 = (
            jnp.dot(head, w_p1_ref[...], preferred_element_type=f32)
            + b_p1_ref[...]
        )
        p1 = jnp.maximum(p1, 0.0)
        prop = jnp.sum(p1 * w_p2_ref[...], axis=-1, keepdims=True) + b_p2_ref[0, 0]

        # Merge prop into lane 2*LATENT_DIM -> one unmasked, lane-dense store.
        col = jax.lax.broadcasted_iota(jnp.int32, head.shape, 1)
        out_ref[...] = jnp.where(col == 2 * LATENT_DIM, prop, head)


# ----------------------------------------------------------------------------
# Plain-JAX glue: normalized adjacency, pooling matrix, parameters, planning.
# ----------------------------------------------------------------------------
def build_norm_adj(edge_index, num_nodes):
    """A_hat = D^{-1/2} (A + I) D^{-1/2}  (PyG GCNConv gcn_norm with self-loops)."""
    src, dst = edge_index[0], edge_index[1]
    a = jnp.zeros((num_nodes, num_nodes), jnp.float32).at[dst, src].set(1.0)
    a = a + jnp.eye(num_nodes, dtype=jnp.float32)
    deg = a.sum(axis=1)
    dinv = 1.0 / jnp.sqrt(deg)
    return a * dinv[:, None] * dinv[None, :]


def build_mean_pool(batch, num_graphs):
    """P[b, n] = 1/count_b if batch[n] == b else 0."""
    onehot = (batch[None, :] == jnp.arange(num_graphs)[:, None]).astype(jnp.float32)
    counts = jnp.maximum(onehot.sum(axis=1, keepdims=True), 1.0)
    return onehot / counts


def init_params(key):
    def lin(key, fan_in, fan_out):
        k1, k2 = jax.random.split(key)
        scale = 1.0 / jnp.sqrt(jnp.float32(fan_in))
        w = jax.random.uniform(k1, (fan_in, fan_out), jnp.float32, -scale, scale)
        b = jax.random.uniform(k2, (1, fan_out), jnp.float32, -scale, scale)
        return w, b

    keys = jax.random.split(key, 6 + NUM_LAYERS)
    w_in, b_in = lin(keys[0], NODE_FEAT_DIM, EMB_DIM)
    wcs, bcs = [], []
    for l in range(NUM_LAYERS):
        w, b = lin(keys[1 + l], EMB_DIM, EMB_DIM)
        wcs.append(w)
        bcs.append(b)
    wc = jnp.stack(wcs)                                              # [L, E, E]
    bc = jnp.stack(bcs).reshape(NUM_LAYERS, 1, EMB_DIM)              # [L, 1, E]
    w_mu, b_mu = lin(keys[1 + NUM_LAYERS], EMB_DIM, LATENT_DIM)
    w_lv, b_lv = lin(keys[2 + NUM_LAYERS], EMB_DIM, LATENT_DIM)
    w_p1, b_p1 = lin(keys[3 + NUM_LAYERS], LATENT_DIM, EMB_DIM)
    w_p2, b_p2 = lin(keys[4 + NUM_LAYERS], EMB_DIM, 1)
    return dict(w_in=w_in, b_in=b_in, wc=wc, bc=bc, w_mu=w_mu, b_mu=b_mu,
                w_lv=w_lv, b_lv=b_lv, w_p1=w_p1, b_p1=b_p1, w_p2=w_p2, b_p2=b_p2)


def _vmem_capacity_bytes():
    """Per-core VMEM capacity (generation-aware), with a conservative fallback."""
    try:
        cap = int(pltpu.get_tpu_info().vmem_capacity_bytes)
        if cap > 0:
            return cap
    except Exception:
        pass
    return 64 << 20   # v7x-sized conservative fallback


def _adj_stream_spec(tile):
    # 3-deep pipeline hides the per-layer HW-snapshot prologue bubble.
    try:
        return pl.BlockSpec((tile, tile), lambda l, i, k: (i, k),
                            pipeline_mode=pl.Buffered(3))
    except (TypeError, AttributeError):
        return pl.BlockSpec((tile, tile), lambda l, i, k: (i, k))


def _plan(n_pad, b_pad, adj_itemsize, budget, force_streamed, tile_cap):
    """Pick (tile, adj_resident, est_bytes) fitting the VMEM budget."""
    base = 4 * (
        2 * n_pad * E_PAD              # H0 input (double-buffered constant block)
        + n_pad * E_PAD                # H scratch (f32)
        + b_pad * E_PAD                # pooled scratch
        + 2 * E_PAD * E_PAD            # wc[l] block (double-buffered)
        + 2 * 2 * E_PAD * HEAD_W       # w_head + w_p1 (double-buffered)
        + 2 * b_pad * HEAD_W           # output slab
        + 16 * E_PAD                   # small biases etc.
    ) + adj_itemsize * n_pad * E_PAD   # HW scratch (adjacency dtype)

    def cost(tile, resident):
        c = 4 * (2 * b_pad * tile + tile * E_PAD)    # pool stream + accumulator
        if resident:
            c += adj_itemsize * 2 * n_pad * n_pad    # constant block, 2 buffers
        else:
            c += adj_itemsize * 3 * tile * tile      # Buffered(3) stream
        return c

    tiles = [t for t in (2048, 1024, 512, 256, 128)
             if t <= min(n_pad, tile_cap) and n_pad % t == 0]
    if not tiles:
        tiles = [128]
    if not force_streamed:
        for t in tiles:
            if base + cost(t, True) <= budget:
                return t, True, base + cost(t, True)
    for t in tiles:
        if base + cost(t, False) <= budget:
            return t, False, base + cost(t, False)
    t = tiles[-1]
    return t, False, base + cost(t, False)


def graph_encoder_forward(x, edge_index, batch, num_graphs, params,
                          adj_dtype=jnp.bfloat16, force_streamed_adj=False,
                          max_tile=None):
    # The prop lane must live inside the zero-padded tail of the head slab.
    assert 2 * LATENT_DIM + 1 <= HEAD_W
    assert EMB_DIM <= E_PAD and LATENT_DIM <= E_PAD

    n = x.shape[0]
    n_pad = _round_up(max(n, 1), 128)
    b_pad = _round_up(max(num_graphs, 1), 8)
    adj_itemsize = jnp.dtype(adj_dtype).itemsize

    # Generation-aware VMEM planning (128 MiB on v5e/v6e, 64 MiB on v7x).
    cap = _vmem_capacity_bytes()
    budget = int(cap * 0.8)                              # headroom for compiler scratch
    tile_cap = 2048 if cap >= (100 << 20) else 512       # big tiles on v5e/v6e only
    if max_tile is not None:
        tile_cap = min(tile_cap, max_tile)
    tile, adj_resident, est_bytes = _plan(
        n_pad, b_pad, adj_itemsize, budget, force_streamed_adj, tile_cap)
    n_blk = n_pad // tile

    # Hoisted input transform (plain XLA): H0 = X @ W_in + b_in.
    h0 = _pad_to(x.astype(jnp.float32) @ params["w_in"] + params["b_in"],
                 (n_pad, E_PAD))

    # Padded dense operands (zero padding is exact: padded node rows never
    # reach real rows because their adjacency columns and pool weights are 0).
    adj = _pad_to(build_norm_adj(edge_index, n), (n_pad, n_pad)).astype(adj_dtype)
    if adj_resident:
        # [n_blk, n_pad, tile]: adj_res[k, r, c] == adj[r, k*tile + c]
        adj_in = adj.reshape(n_pad, n_blk, tile).transpose(1, 0, 2)
        adj_spec = pl.BlockSpec((n_blk, n_pad, tile), lambda l, i, k: (0, 0, 0))
    else:
        adj_in = adj
        adj_spec = _adj_stream_spec(tile)

    pool = _pad_to(build_mean_pool(batch, num_graphs), (b_pad, n_pad))

    wc = _pad_to(params["wc"], (NUM_LAYERS, E_PAD, E_PAD))
    bc = _pad_to(params["bc"], (NUM_LAYERS, 1, E_PAD))
    w_head = _pad_to(jnp.concatenate([params["w_mu"], params["w_lv"]], axis=1),
                     (E_PAD, HEAD_W))
    b_head = _pad_to(jnp.concatenate([params["b_mu"], params["b_lv"]], axis=1),
                     (1, HEAD_W))
    w_p1 = _pad_to(params["w_p1"], (HEAD_W, E_PAD))    # rows >= LATENT_DIM zero
    b_p1 = _pad_to(params["b_p1"], (1, E_PAD))
    w_p2 = _pad_to(params["w_p2"].T, (1, E_PAD))
    b_p2 = params["b_p2"].reshape(1, 1)

    def const2(shape):
        return pl.BlockSpec(shape, lambda l, i, k: (0, 0))

    in_specs = [
        const2((n_pad, E_PAD)),                                      # h0
        pl.BlockSpec((b_pad, tile), lambda l, i, k: (0, i)),         # pool row tile
        adj_spec,                                                    # adjacency
        pl.BlockSpec((1, E_PAD, E_PAD), lambda l, i, k: (l, 0, 0)),  # wc[l]
        pl.BlockSpec((1, 1, E_PAD), lambda l, i, k: (l, 0, 0)),      # bc[l]
        const2((E_PAD, HEAD_W)),                                     # w_head
        const2((1, HEAD_W)),                                         # b_head
        const2((HEAD_W, E_PAD)),                                     # w_p1
        const2((1, E_PAD)),                                          # b_p1
        const2((1, E_PAD)),                                          # w_p2
        pl.BlockSpec(memory_space=pltpu.MemorySpace.SMEM),           # b_p2 scalar
    ]
    out_spec = pl.BlockSpec((b_pad, HEAD_W), lambda l, i, k: (0, 0))
    out_shape = jax.ShapeDtypeStruct((b_pad, HEAD_W), jnp.float32)

    scratch_shapes = [
        pltpu.VMEM((n_pad, E_PAD), jnp.float32),   # H   (resident node embeddings)
        pltpu.VMEM((n_pad, E_PAD), adj_dtype),     # HW  (H @ W_l snapshot, bf16)
        pltpu.VMEM((tile, E_PAD), jnp.float32),    # row-tile accumulator
        pltpu.VMEM((b_pad, E_PAD), jnp.float32),   # pooled graph embeddings
    ]

    vmem_limit = int(min(budget, max(est_bytes + (8 << 20), 32 << 20)))

    grid_spec = pltpu.PrefetchScalarGridSpec(
        num_scalar_prefetch=0,
        grid=(NUM_LAYERS, n_blk, n_blk),
        in_specs=in_specs,
        out_specs=out_spec,
        scratch_shapes=scratch_shapes,
    )

    kernel = functools.partial(graph_encoder_kernel, adj_resident=adj_resident)

    slab = pl.pallas_call(
        kernel,
        out_shape=out_shape,
        grid_spec=grid_spec,
        compiler_params=pltpu.CompilerParams(
            # Every axis carries state through the resident H/HW/acc/pooled
            # scratch, so all must be 'arbitrary'.
            dimension_semantics=("arbitrary", "arbitrary", "arbitrary"),
            vmem_limit_bytes=vmem_limit,
        ),
    )(h0, pool, adj_in, wc, bc, w_head, b_head, w_p1, b_p1, w_p2, b_p2)

    mu = slab[:num_graphs, :LATENT_DIM]
    log_var = slab[:num_graphs, LATENT_DIM:2 * LATENT_DIM]
    prop = slab[:num_graphs, 2 * LATENT_DIM:2 * LATENT_DIM + 1]
    return mu, log_var, prop


# ----------------------------------------------------------------------------
# Pure-JAX reference (for correctness check).
# ----------------------------------------------------------------------------
def reference_forward(x, edge_index, batch, num_graphs, params):
    adj = build_norm_adj(edge_index, x.shape[0])
    pool = build_mean_pool(batch, num_graphs)
    h = x @ params["w_in"] + params["b_in"]
    for l in range(NUM_LAYERS):
        h = adj @ (h @ params["wc"][l]) + params["bc"][l]
    hg = pool @ h
    mu = hg @ params["w_mu"] + params["b_mu"]
    lv = hg @ params["w_lv"] + params["b_lv"]
    p1 = jnp.maximum(mu @ params["w_p1"] + params["b_p1"], 0.0)
    prop = p1 @ params["w_p2"] + params["b_p2"]
    return mu, lv, prop


def complete_graph_edges(n_nodes, offset):
    src, dst = jnp.meshgrid(jnp.arange(n_nodes), jnp.arange(n_nodes), indexing="ij")
    mask = src != dst
    return jnp.stack([src[mask], dst[mask]], axis=0) + offset


if __name__ == "__main__":
    key = jax.random.PRNGKey(0)
    k_param, k_x = jax.random.split(key)

    # Batch of 2 complete graphs with 96 nodes each -> N = 192 nodes total.
    nodes_per_graph = 96
    num_graphs = 2
    n_total = nodes_per_graph * num_graphs

    x = jax.random.normal(k_x, (n_total, NODE_FEAT_DIM), jnp.float32)
    edge_index = jnp.concatenate(
        [complete_graph_edges(nodes_per_graph, g * nodes_per_graph)
         for g in range(num_graphs)],
        axis=1,
    )
    batch = jnp.repeat(jnp.arange(num_graphs), nodes_per_graph)

    params = init_params(k_param)
    mu_ref, lv_ref, prop_ref = reference_forward(x, edge_index, batch, num_graphs, params)

    # 1) Performance path: bf16 adjacency / HW, auto residency & tile plan.
    mu, log_var, prop = graph_encoder_forward(x, edge_index, batch, num_graphs, params)
    jax.block_until_ready((mu, log_var, prop))
    assert mu.shape == (num_graphs, LATENT_DIM)
    assert log_var.shape == (num_graphs, LATENT_DIM)
    assert prop.shape == (num_graphs, 1)
    assert jnp.allclose(mu, mu_ref, atol=5e-2, rtol=5e-2)
    assert jnp.allclose(log_var, lv_ref, atol=5e-2, rtol=5e-2)
    assert jnp.allclose(prop, prop_ref, atol=5e-2, rtol=5e-2)

    # 2) f32 validation path with forced tile streaming (exercises the k-axis
    #    accumulator and multi-row-tile pooled accumulation) - tight tolerance.
    mu32, lv32, p32 = graph_encoder_forward(
        x, edge_index, batch, num_graphs, params,
        adj_dtype=jnp.float32, force_streamed_adj=True, max_tile=128)
    jax.block_until_ready((mu32, lv32, p32))
    assert jnp.allclose(mu32, mu_ref, atol=1e-3, rtol=1e-3)
    assert jnp.allclose(lv32, lv_ref, atol=1e-3, rtol=1e-3)
    assert jnp.allclose(p32, prop_ref, atol=1e-3, rtol=1e-3)

    print("KERNEL_OK")
</pallas_src>

<mosaic_0001>
module attributes {stable_mosaic.version = 11 : i64} {
  func.func @graph_encoder_kernel(%arg0: i32, %arg1: i32, %arg2: i32, %arg3: memref<256x128xf32, #tpu.memory_space<vmem>>, %arg4: memref<8x256xf32, #tpu.memory_space<vmem>>, %arg5: memref<1x256x256xbf16, #tpu.memory_space<vmem>>, %arg6: memref<1x128x128xf32, #tpu.memory_space<vmem>>, %arg7: memref<1x1x128xf32, #tpu.memory_space<vmem>>, %arg8: memref<128x128xf32, #tpu.memory_space<vmem>>, %arg9: memref<1x128xf32, #tpu.memory_space<vmem>>, %arg10: memref<128x128xf32, #tpu.memory_space<vmem>>, %arg11: memref<1x128xf32, #tpu.memory_space<vmem>>, %arg12: memref<1x128xf32, #tpu.memory_space<vmem>>, %arg13: memref<1x1xf32, #tpu.memory_space<smem>>, %arg14: memref<8x128xf32, #tpu.memory_space<vmem>>, %arg15: memref<256x128xf32, #tpu.memory_space<vmem>>, %arg16: memref<256x128xbf16, #tpu.memory_space<vmem>>, %arg17: memref<256x128xf32, #tpu.memory_space<vmem>>, %arg18: memref<8x128xf32, #tpu.memory_space<vmem>>) attributes {dimension_semantics = [#tpu.dimension_semantics<arbitrary>, #tpu.dimension_semantics<arbitrary>, #tpu.dimension_semantics<arbitrary>], iteration_bounds = array<i64: 4, 1, 1>, scalar_prefetch = 0 : i64, scratch_operands = 4 : i64, tpu.core_type = #tpu.core_type<tc>, window_params = [{pipeline_mode = #tpu.pipeline_mode<synchronous>, transform_indices = @transform_0, window_bounds = array<i64: 256, 128>}, {transform_indices = @transform_1, window_bounds = array<i64: 8, 256>}, {pipeline_mode = #tpu.pipeline_mode<synchronous>, transform_indices = @transform_2, window_bounds = array<i64: 1, 256, 256>}, {transform_indices = @transform_3, window_bounds = array<i64: 1, 128, 128>}, {transform_indices = @transform_4, window_bounds = array<i64: 1, 1, 128>}, {pipeline_mode = #tpu.pipeline_mode<synchronous>, transform_indices = @transform_5, window_bounds = array<i64: 128, 128>}, {pipeline_mode = #tpu.pipeline_mode<synchronous>, transform_indices = @transform_6, window_bounds = array<i64: 1, 128>}, {pipeline_mode = #tpu.pipeline_mode<synchronous>, transform_indices = @transform_7, window_bounds = array<i64: 128, 128>}, {pipeline_mode = #tpu.pipeline_mode<synchronous>, transform_indices = @transform_8, window_bounds = array<i64: 1, 128>}, {pipeline_mode = #tpu.pipeline_mode<synchronous>, transform_indices = @transform_9, window_bounds = array<i64: 1, 128>}, {transform_indices = @transform_10, window_bounds = array<i64: 1, 1>}, {pipeline_mode = #tpu.pipeline_mode<synchronous>, transform_indices = @transform_11, window_bounds = array<i64: 8, 128>}]} {
    %c256_i32 = arith.constant 256 : i32
    %0 = arith.muli %arg1, %c256_i32 : i32
    %1 = tpu.assume_multiple %0, 256 : i32
    %c256_i32_0 = arith.constant 256 : i32
    %2 = arith.muli %arg2, %c256_i32_0 : i32
    %3 = tpu.assume_multiple %2, 256 : i32
    %c0_i32 = arith.constant 0 : i32
    %4 = arith.cmpi eq, %arg1, %c0_i32 : i32
    %c0_i32_1 = arith.constant 0 : i32
    %5 = arith.cmpi eq, %arg2, %c0_i32_1 : i32
    %6 = arith.andi %4, %5 : i1
    %7 = arith.extui %6 : i1 to i32
    %c0_i32_2 = arith.constant 0 : i32
    %8 = arith.cmpi ne, %7, %c0_i32_2 : i32
    scf.if %8 {
      %c0_i32_15 = arith.constant 0 : i32
      %32 = arith.cmpi eq, %arg0, %c0_i32_15 : i32
      %33 = arith.extui %32 : i1 to i32
      %c0_i32_16 = arith.constant 0 : i32
      %34 = arith.cmpi ne, %33, %c0_i32_16 : i32
      scf.if %34 {
        %c0_27 = arith.constant 0 : index
        %c0_28 = arith.constant 0 : index
        %44 = vector.load %arg3[%c0_27, %c0_28] : memref<256x128xf32, #tpu.memory_space<vmem>>, vector<256x128xf32>
        %c0_29 = arith.constant 0 : index
        %c0_30 = arith.constant 0 : index
        %45 = vector.load %arg15[%c0_29, %c0_30] : memref<256x128xf32, #tpu.memory_space<vmem>>, vector<256x128xf32>
        tpu.vector_store %arg15[%c0_29, %c0_30], %44 {strides = array<i32>} : memref<256x128xf32, #tpu.memory_space<vmem>>, vector<256x128xf32>,
      } else {
      }
      %c0_17 = arith.constant 0 : index
      %c0_18 = arith.constant 0 : index
      %35 = vector.load %arg15[%c0_17, %c0_18] : memref<256x128xf32, #tpu.memory_space<vmem>>, vector<256x128xf32>
      %c0_19 = arith.constant 0 : index
      %c0_20 = arith.constant 0 : index
      %c0_21 = arith.constant 0 : index
      %36 = vector.load %arg6[%c0_19, %c0_20, %c0_21] : memref<1x128x128xf32, #tpu.memory_space<vmem>>, vector<1x128x128xf32>
      %37 = vector.shape_cast %36 : vector<1x128x128xf32> to vector<128x128xf32>
      %cst_22 = arith.constant dense<0.000000e+00> : vector<256x128xf32>
      %38 = tpu.matmul %35, %37, %cst_22 {dimension_numbers = #tpu.dot_dimension_numbers<[1], [0], [0], [1], [0, 0, 1, 1], [], []>} : vector<256x128xf32>, vector<128x128xf32>, vector<256x128xf32> -> vector<256x128xf32>
      %39 = arith.truncf %38 : vector<256x128xf32> to vector<256x128xbf16>
      %c0_23 = arith.constant 0 : index
      %c0_24 = arith.constant 0 : index
      %40 = vector.load %arg16[%c0_23, %c0_24] : memref<256x128xbf16, #tpu.memory_space<vmem>>, vector<256x128xbf16>
      tpu.vector_store %arg16[%c0_23, %c0_24], %39 {strides = array<i32>} : memref<256x128xbf16, #tpu.memory_space<vmem>>, vector<256x128xbf16>,
      %c3_i32_25 = arith.constant 3 : i32
      %41 = arith.cmpi eq, %arg0, %c3_i32_25 : i32
      %42 = arith.extui %41 : i1 to i32
      %c0_i32_26 = arith.constant 0 : i32
      %43 = arith.cmpi ne, %42, %c0_i32_26 : i32
      scf.if %43 {
        %cst_27 = arith.constant 0.000000e+00 : f32
        %44 = vector.broadcast %cst_27 : f32 to vector<8x128xf32>
        %c0_28 = arith.constant 0 : index
        %c0_29 = arith.constant 0 : index
        %45 = vector.load %arg18[%c0_28, %c0_29] : memref<8x128xf32, #tpu.memory_space<vmem>>, vector<8x128xf32>
        tpu.vector_store %arg18[%c0_28, %c0_29], %44 {strides = array<i32>} : memref<8x128xf32, #tpu.memory_space<vmem>>, vector<8x128xf32>,
      } else {
      }
    } else {
    }
    %c0_i32_3 = arith.constant 0 : i32
    %9 = arith.cmpi eq, %arg2, %c0_i32_3 : i32
    %10 = arith.extui %9 : i1 to i32
    %c0_i32_4 = arith.constant 0 : i32
    %11 = arith.cmpi ne, %10, %c0_i32_4 : i32
    scf.if %11 {
      %cst_15 = arith.constant 0.000000e+00 : f32
      %32 = vector.broadcast %cst_15 : f32 to vector<256x128xf32>
      %c0_16 = arith.constant 0 : index
      %c0_17 = arith.constant 0 : index
      %33 = vector.load %arg17[%c0_16, %c0_17] : memref<256x128xf32, #tpu.memory_space<vmem>>, vector<256x128xf32>
      tpu.vector_store %arg17[%c0_16, %c0_17], %32 {strides = array<i32>} : memref<256x128xf32, #tpu.memory_space<vmem>>, vector<256x128xf32>,
    } else {
    }
    %12 = arith.index_cast %arg2 : i32 to index
    %13 = arith.index_cast %1 : i32 to index
    %c0 = arith.constant 0 : index
    %14 = vector.load %arg5[%12, %13, %c0] : memref<1x256x256xbf16, #tpu.memory_space<vmem>>, vector<1x256x256xbf16>
    %15 = vector.shape_cast %14 : vector<1x256x256xbf16> to vector<256x256xbf16>
    %c0_5 = arith.constant 0 : index
    %c0_6 = arith.constant 0 : index
    %16 = vector.load %arg17[%c0_5, %c0_6] : memref<256x128xf32, #tpu.memory_space<vmem>>, vector<256x128xf32>
    %17 = arith.index_cast %3 : i32 to index
    %c0_7 = arith.constant 0 : index
    %18 = vector.load %arg16[%17, %c0_7] : memref<256x128xbf16, #tpu.memory_space<vmem>>, vector<256x128xbf16>
    %cst = arith.constant dense<0.000000e+00> : vector<256x128xf32>
    %19 = tpu.matmul %15, %18, %cst {dimension_numbers = #tpu.dot_dimension_numbers<[1], [0], [0], [1], [0, 0, 1, 1], [], []>} : vector<256x256xbf16>, vector<256x128xbf16>, vector<256x128xf32> -> vector<256x128xf32>
    %20 = arith.addf %16, %19 : vector<256x128xf32>
    %c0_8 = arith.constant 0 : index
    %c0_9 = arith.constant 0 : index
    %21 = vector.load %arg17[%c0_8, %c0_9] : memref<256x128xf32, #tpu.memory_space<vmem>>, vector<256x128xf32>
    tpu.vector_store %arg17[%c0_8, %c0_9], %20 {strides = array<i32>} : memref<256x128xf32, #tpu.memory_space<vmem>>, vector<256x128xf32>,
    %c0_i32_10 = arith.constant 0 : i32
    %22 = arith.cmpi eq, %arg2, %c0_i32_10 : i32
    %23 = arith.extui %22 : i1 to i32
    %c0_i32_11 = arith.constant 0 : i32
    %24 = arith.cmpi ne, %23, %c0_i32_11 : i32
    scf.if %24 {
      %c0_15 = arith.constant 0 : index
      %c0_16 = arith.constant 0 : index
      %32 = vector.load %arg17[%c0_15, %c0_16] : memref<256x128xf32, #tpu.memory_space<vmem>>, vector<256x128xf32>
      %c0_17 = arith.constant 0 : index
      %c0_18 = arith.constant 0 : index
      %c0_19 = arith.constant 0 : index
      %33 = vector.load %arg7[%c0_17, %c0_18, %c0_19] : memref<1x1x128xf32, #tpu.memory_space<vmem>>, vector<1x1x128xf32>
      %34 = vector.shape_cast %33 : vector<1x1x128xf32> to vector<1x128xf32>
      %35 = vector.broadcast %34 : vector<1x128xf32> to vector<256x128xf32>
      %36 = arith.addf %32, %35 : vector<256x128xf32>
      %37 = arith.index_cast %1 : i32 to index
      %c0_20 = arith.constant 0 : index
      %38 = vector.load %arg15[%37, %c0_20] : memref<256x128xf32, #tpu.memory_space<vmem>>, vector<256x128xf32>
      tpu.vector_store %arg15[%37, %c0_20], %36 {strides = array<i32>} : memref<256x128xf32, #tpu.memory_space<vmem>>, vector<256x128xf32>,
      %c3_i32_21 = arith.constant 3 : i32
      %39 = arith.cmpi eq, %arg0, %c3_i32_21 : i32
      %40 = arith.extui %39 : i1 to i32
      %c0_i32_22 = arith.constant 0 : i32
      %41 = arith.cmpi ne, %40, %c0_i32_22 : i32
      scf.if %41 {
        %c0_23 = arith.constant 0 : index
        %c0_24 = arith.constant 0 : index
        %42 = vector.load %arg18[%c0_23, %c0_24] : memref<8x128xf32, #tpu.memory_space<vmem>>, vector<8x128xf32>
        %c0_25 = arith.constant 0 : index
        %c0_26 = arith.constant 0 : index
        %43 = vector.load %arg4[%c0_25, %c0_26] : memref<8x256xf32, #tpu.memory_space<vmem>>, vector<8x256xf32>
        %cst_27 = arith.constant dense<0.000000e+00> : vector<8x128xf32>
        %44 = tpu.matmul %43, %36, %cst_27 {dimension_numbers = #tpu.dot_dimension_numbers<[1], [0], [0], [1], [0, 0, 1, 1], [], []>} : vector<8x256xf32>, vector<256x128xf32>, vector<8x128xf32> -> vector<8x128xf32>
        %45 = arith.addf %42, %44 : vector<8x128xf32>
        %c0_28 = arith.constant 0 : index
        %c0_29 = arith.constant 0 : index
        %46 = vector.load %arg18[%c0_28, %c0_29] : memref<8x128xf32, #tpu.memory_space<vmem>>, vector<8x128xf32>
        tpu.vector_store %arg18[%c0_28, %c0_29], %45 {strides = array<i32>} : memref<8x128xf32, #tpu.memory_space<vmem>>, vector<8x128xf32>,
      } else {
      }
    } else {
    }
    %c3_i32 = arith.constant 3 : i32
    %25 = arith.cmpi eq, %arg0, %c3_i32 : i32
    %c0_i32_12 = arith.constant 0 : i32
    %26 = arith.cmpi eq, %arg1, %c0_i32_12 : i32
    %27 = arith.andi %25, %26 : i1
    %c0_i32_13 = arith.constant 0 : i32
    %28 = arith.cmpi eq, %arg2, %c0_i32_13 : i32
    %29 = arith.andi %27, %28 : i1
    %30 = arith.extui %29 : i1 to i32
    %c0_i32_14 = arith.constant 0 : i32
    %31 = arith.cmpi ne, %30, %c0_i32_14 : i32
    scf.if %31 {
      %c0_15 = arith.constant 0 : index
      %c0_16 = arith.constant 0 : index
      %32 = vector.load %arg18[%c0_15, %c0_16] : memref<8x128xf32, #tpu.memory_space<vmem>>, vector<8x128xf32>
      %c0_17 = arith.constant 0 : index
      %c0_18 = arith.constant 0 : index
      %33 = vector.load %arg8[%c0_17, %c0_18] : memref<128x128xf32, #tpu.memory_space<vmem>>, vector<128x128xf32>
      %cst_19 = arith.constant dense<0.000000e+00> : vector<8x128xf32>
      %34 = tpu.matmul %32, %33, %cst_19 {dimension_numbers = #tpu.dot_dimension_numbers<[1], [0], [0], [1], [0, 0, 1, 1], [], []>} : vector<8x128xf32>, vector<128x128xf32>, vector<8x128xf32> -> vector<8x128xf32>
      %c0_20 = arith.constant 0 : index
      %c0_21 = arith.constant 0 : index
      %35 = vector.load %arg9[%c0_20, %c0_21] : memref<1x128xf32, #tpu.memory_space<vmem>>, vector<1x128xf32>
      %36 = vector.broadcast %35 : vector<1x128xf32> to vector<8x128xf32>
      %37 = arith.addf %34, %36 : vector<8x128xf32>
      %c0_22 = arith.constant 0 : index
      %c0_23 = arith.constant 0 : index
      %38 = vector.load %arg10[%c0_22, %c0_23] : memref<128x128xf32, #tpu.memory_space<vmem>>, vector<128x128xf32>
      %cst_24 = arith.constant dense<0.000000e+00> : vector<8x128xf32>
      %39 = tpu.matmul %37, %38, %cst_24 {dimension_numbers = #tpu.dot_dimension_numbers<[1], [0], [0], [1], [0, 0, 1, 1], [], []>} : vector<8x128xf32>, vector<128x128xf32>, vector<8x128xf32> -> vector<8x128xf32>
      %c0_25 = arith.constant 0 : index
      %c0_26 = arith.constant 0 : index
      %40 = vector.load %arg11[%c0_25, %c0_26] : memref<1x128xf32, #tpu.memory_space<vmem>>, vector<1x128xf32>
      %41 = vector.broadcast %40 : vector<1x128xf32> to vector<8x128xf32>
      %42 = arith.addf %39, %41 : vector<8x128xf32>
      %cst_27 = arith.constant 0.000000e+00 : f32
      %43 = vector.broadcast %cst_27 : f32 to vector<8x128xf32>
      %44 = arith.maximumf %42, %43 : vector<8x128xf32>
      %c0_28 = arith.constant 0 : index
      %c0_29 = arith.constant 0 : index
      %45 = vector.load %arg12[%c0_28, %c0_29] : memref<1x128xf32, #tpu.memory_space<vmem>>, vector<1x128xf32>
      %46 = vector.broadcast %45 : vector<1x128xf32> to vector<8x128xf32>
      %47 = arith.mulf %44, %46 : vector<8x128xf32>
      %cst_30 = arith.constant dense<0.000000e+00> : vector<8xf32>
      %48 = vector.multi_reduction <add>, %47, %cst_30 [1] : vector<8x128xf32> to vector<8xf32>
      %49 = vector.shape_cast %48 : vector<8xf32> to vector<8x1xf32>
      %c0_31 = arith.constant 0 : index
      %c0_32 = arith.constant 0 : index
      %50 = memref.load %arg13[%c0_31, %c0_32] : memref<1x1xf32, #tpu.memory_space<smem>>
      %51 = vector.broadcast %50 : f32 to vector<8x1xf32>
      %52 = arith.addf %49, %51 : vector<8x1xf32>
      %53 = tpu.iota {dimensions = array<i32: 1>} : vector<8x128xi32>
      %c64_i32 = arith.constant 64 : i32
      %54 = vector.broadcast %c64_i32 : i32 to vector<8x128xi32>
      %55 = arith.cmpi eq, %53, %54 : vector<8x128xi32>
      %56 = vector.shape_cast %52 : vector<8x1xf32> to vector<8x1xf32>
      %57 = vector.broadcast %56 : vector<8x1xf32> to vector<8x128xf32>
      %58 = arith.select %55, %57, %37 : vector<8x128xi1>, vector<8x128xf32>
      %c0_33 = arith.constant 0 : index
      %c0_34 = arith.constant 0 : index
      %59 = vector.load %arg14[%c0_33, %c0_34] : memref<8x128xf32, #tpu.memory_space<vmem>>, vector<8x128xf32>
      tpu.vector_store %arg14[%c0_33, %c0_34], %58 {strides = array<i32>} : memref<8x128xf32, #tpu.memory_space<vmem>>, vector<8x128xf32>,
    } else {
    }
    return
  }
  func.func @transform_0(%arg0: i32, %arg1: i32, %arg2: i32) -> (i32, i32) {
    %c0_i32 = arith.constant 0 : i32
    %c0_i32_0 = arith.constant 0 : i32
    %c0_i32_1 = arith.constant 0 : i32
    return %c0_i32, %c0_i32_0 : i32, i32
  }
  func.func @transform_1(%arg0: i32, %arg1: i32, %arg2: i32) -> (i32, i32) {
    %c0_i32 = arith.constant 0 : i32
    %c0_i32_0 = arith.constant 0 : i32
    return %c0_i32, %arg1 : i32, i32
  }
  func.func @transform_2(%arg0: i32, %arg1: i32, %arg2: i32) -> (i32, i32, i32) {
    %c0_i32 = arith.constant 0 : i32
    %c0_i32_0 = arith.constant 0 : i32
    %c0_i32_1 = arith.constant 0 : i32
    %c0_i32_2 = arith.constant 0 : i32
    return %c0_i32, %c0_i32_0, %c0_i32_1 : i32, i32, i32
  }
  func.func @transform_3(%arg0: i32, %arg1: i32, %arg2: i32) -> (i32, i32, i32) {
    %c0_i32 = arith.constant 0 : i32
    %c0_i32_0 = arith.constant 0 : i32
    %c0_i32_1 = arith.constant 0 : i32
    return %arg0, %c0_i32, %c0_i32_0 : i32, i32, i32
  }
  func.func @transform_4(%arg0: i32, %arg1: i32, %arg2: i32) -> (i32, i32, i32) {
    %c0_i32 = arith.constant 0 : i32
    %c0_i32_0 = arith.constant 0 : i32
    %c0_i32_1 = arith.constant 0 : i32
    return %arg0, %c0_i32, %c0_i32_0 : i32, i32, i32
  }
  func.func @transform_5(%arg0: i32, %arg1: i32, %arg2: i32) -> (i32, i32) {
    %c0_i32 = arith.constant 0 : i32
    %c0_i32_0 = arith.constant 0 : i32
    %c0_i32_1 = arith.constant 0 : i32
    return %c0_i32, %c0_i32_0 : i32, i32
  }
  func.func @transform_6(%arg0: i32, %arg1: i32, %arg2: i32) -> (i32, i32) {
    %c0_i32 = arith.constant 0 : i32
    %c0_i32_0 = arith.constant 0 : i32
    %c0_i32_1 = arith.constant 0 : i32
    return %c0_i32, %c0_i32_0 : i32, i32
  }
  func.func @transform_7(%arg0: i32, %arg1: i32, %arg2: i32) -> (i32, i32) {
    %c0_i32 = arith.constant 0 : i32
    %c0_i32_0 = arith.constant 0 : i32
    %c0_i32_1 = arith.constant 0 : i32
    return %c0_i32, %c0_i32_0 : i32, i32
  }
  func.func @transform_8(%arg0: i32, %arg1: i32, %arg2: i32) -> (i32, i32) {
    %c0_i32 = arith.constant 0 : i32
    %c0_i32_0 = arith.constant 0 : i32
    %c0_i32_1 = arith.constant 0 : i32
    return %c0_i32, %c0_i32_0 : i32, i32
  }
  func.func @transform_9(%arg0: i32, %arg1: i32, %arg2: i32) -> (i32, i32) {
    %c0_i32 = arith.constant 0 : i32
    %c0_i32_0 = arith.constant 0 : i32
    %c0_i32_1 = arith.constant 0 : i32
    return %c0_i32, %c0_i32_0 : i32, i32
  }
  func.func @transform_10(%arg0: i32, %arg1: i32, %arg2: i32) -> (i32, i32) {
    %c0_i32 = arith.constant 0 : i32
    %c0_i32_0 = arith.constant 0 : i32
    %c0_i32_1 = arith.constant 0 : i32
    return %c0_i32, %c0_i32_0 : i32, i32
  }
  func.func @transform_11(%arg0: i32, %arg1: i32, %arg2: i32) -> (i32, i32) {
    %c0_i32 = arith.constant 0 : i32
    %c0_i32_0 = arith.constant 0 : i32
    %c0_i32_1 = arith.constant 0 : i32
    return %c0_i32, %c0_i32_0 : i32, i32
  }
}

</mosaic_0001>

<llo_original>
// kernel: tpu_custom_call.1
$region0: #{tpu_custom_call.1}
  #allocation0 [shape = 'u32[]', space=smem, size = 0x4, offset = 0x4, fixed_abs, tag = 'smem constant byte address 0x4 - core index']
  #allocation1 [shape = 'u32[144,128]{1,0:T(1,128)}', space=vmem, size = 0x12000, scoped, tag = 'internal scratch']
  #allocation2 [shape = 'f32[256,128]{1,0:T(8,128)}', space=vmem, size = 0x20000, scoped, tag = 'scratch operand']
  #allocation3 [shape = 'bf16[256,128]{1,0:T(16,128)(2,1)}', space=vmem, size = 0x10000, scoped, tag = 'scratch operand']
  #allocation4 [shape = 'f32[256,128]{1,0:T(8,128)}', space=vmem, size = 0x20000, scoped, tag = 'scratch operand']
  #allocation5 [shape = 'f32[8,128]{1,0:T(8,128)}', space=vmem, size = 0x1000, scoped, tag = 'scratch operand']
  #allocation6 [shape = 'f32[1,1]{1,0:T(1,128)S(6)}', space=smem, size = 0x200, scoped, tag = 'scoped memory for tpu_custom_call.1']
  %s0 = inlined_call_operand.hbm [shape: f32[256,128], index: 0, kind: input, shape index: {}]
  %s1 = inlined_call_operand.hbm [shape: f32[8,256], index: 1, kind: input, shape index: {}]
  %s2 = inlined_call_operand.hbm [shape: bf16[1,256,256], index: 2, kind: input, shape index: {}]
  %s3 = inlined_call_operand.hbm [shape: f32[4,128,128], index: 3, kind: input, shape index: {}]
  %s4 = inlined_call_operand.vmem [shape: f32[4,1,128], index: 4, kind: input, shape index: {}]
  %s5 = inlined_call_operand.hbm [shape: f32[128,128], index: 5, kind: input, shape index: {}]
  %s6 = inlined_call_operand.vmem [shape: f32[1,128], index: 6, kind: input, shape index: {}]
  %s7 = inlined_call_operand.hbm [shape: f32[128,128], index: 7, kind: input, shape index: {}]
  %s8 = inlined_call_operand.vmem [shape: f32[1,128], index: 8, kind: input, shape index: {}]
  %s9 = inlined_call_operand.vmem [shape: f32[1,128], index: 9, kind: input, shape index: {}]
  %s10 = inlined_call_operand.<no memory space> [shape: f32[1,1], index: 10, kind: input, shape index: {}]
  %s11 = inlined_call_operand.hbm [shape: f32[8,128], index: 11, kind: output, shape index: {}]
  %s12 = sld [smem:[#allocation0]]
  $region129: #{tpu_custom_call.1} parent=0
    _
  %s14 = ssub.s32 1, %s12
  %s15 = scalar_select 0, %s14, %s12
  %16 = sst [smem:[#allocation6]] %s10
  $region1: #{tpu_custom_call.1} parent=0
    #allocation7 [shape = 'u8[131072]{0}', space=vmem, size = 0x20000, scoped, tag = 'input window, operand 0, single buffered']
    #allocation8 [shape = 's32[2]{0}', space=sflag, size = 0x8, scoped, tag = 'scoped memory for tpu_custom_call.1']
    #allocation9 [shape = 's32[2]{0}', space=sflag, size = 0x8, scoped, tag = 'scoped memory for tpu_custom_call.1']
    #allocation10 [shape = 'u8[8192]{0}', space=vmem, size = 0x2000, scoped, tag = 'input window, operand 1, single buffered']
    #allocation11 [shape = 's32[1]{0}', space=sflag, size = 0x4, scoped, tag = 'scoped memory for tpu_custom_call.1']
    #allocation12 [shape = 'u8[131072]{0}', space=vmem, size = 0x20000, scoped, tag = 'input window, operand 2, single buffered']
    #allocation13 [shape = 'u8[131072]{0}', space=vmem, size = 0x20000, scoped, tag = 'input window, operand 3']
    #allocation14 [shape = 's32[2]{0}', space=sflag, size = 0x8, scoped, tag = 'scoped memory for tpu_custom_call.1']
    #allocation15 [shape = 'u8[65536]{0}', space=vmem, size = 0x10000, scoped, tag = 'input window, operand 5, single buffered']
    #allocation16 [shape = 'u8[65536]{0}', space=vmem, size = 0x10000, scoped, tag = 'input window, operand 7, single buffered']
    #allocation17 [shape = 's32[1]{0}', space=sflag, size = 0x4, scoped, tag = 'scoped memory for tpu_custom_call.1']
    #allocation18 [shape = 'u8[4096]{0}', space=vmem, size = 0x1000, scoped, tag = 'output window, operand 0, single buffered']
    %17 = vsyncpa [#allocation8], 0
    %18 = vsyncpa [#allocation11], 0
    %19 = vsyncpa [#allocation14], 0
    %s20 = scalar_lea.sflag [#allocation14], 1
    %21 = vsyncpa %s20, 0
    %22 = vsyncpa [#allocation17], 0
    %23 = vsyncpa [#allocation9], 0
    loop: start=0, step=1, limit=6
    $region2: #{tpu_custom_call.1} parent=1 // loop_pre_header
      _
    $region3: #{tpu_custom_call.1} parent=1 // loop_header
      %s25 = sphi 0, %s29
      %p26 = scmp.ge.s32.totalorder %s25, 6
      %s32 = sphi 0, %s51
      %s33 = sphi 0, %s47
      %s34 = sphi 0, %s43
      %s35 = sphi 0, %s32
      %s36 = sphi 0, %s33
      %s37 = sphi 0, %s34
      %s38 = sphi 0, %s35
      %s39 = sphi 0, %s36
      %s40 = sphi 0, %s37
      %s52 = sphi 0, %s52
      %s54 = sphi 0, %s52
      %s55 = sphi 0, %s54
      %s69 = sphi 0, %s55
      %s75 = sphi 0, %s77
      %s78 = sphi 0, %s75
      %s79 = sphi 0, %s78
      %s95 = sphi 0, %s79
      %s99 = sphi 0, %s99
      %s101 = sphi 0, %s99
      %s102 = sphi 0, %s101
      %s116 = sphi 0, %s102
      %s122 = sphi 0, %s124
      %s125 = sphi 0, %s122
      %s126 = sphi 0, %s125
      %s142 = sphi 0, %s126
      %s148 = sphi 0, %s150
      %s151 = sphi 0, %s148
      %s152 = sphi 0, %s151
      %s168 = sphi 0, %s152
      %s172 = sphi 0, %s172
      %s174 = sphi 0, %s172
      %s175 = sphi 0, %s174
      %s189 = sphi 0, %s175
      %s193 = sphi 0, %s193
      %s195 = sphi 0, %s193
      %s196 = sphi 0, %s195
      %s210 = sphi 0, %s196
      %s214 = sphi 0, %s214
      %s216 = sphi 0, %s214
      %s217 = sphi 0, %s216
      %s231 = sphi 0, %s217
      %s235 = sphi 0, %s235
      %s237 = sphi 0, %s235
      %s238 = sphi 0, %s237
      %s252 = sphi 0, %s238
      %s256 = sphi 0, %s256
      %s258 = sphi 0, %s256
      %s259 = sphi 0, %s258
      %s273 = sphi 0, %s259
      %s277 = sphi 0, %s277
      %s279 = sphi 0, %s277
      %s280 = sphi 0, %s279
      %s294 = sphi 0, %s280
      %s298 = sphi 0, %s298
      %s300 = sphi 0, %s298
      %s301 = sphi 0, %s300
      %s315 = sphi 0, %s301
    $region4: #{tpu_custom_call.1} parent=1 // loop_header_branch
      %28 = sbr.rel (%p26) target = $region8
    $region5: #{tpu_custom_call.1} parent=1 // loop_body
      %s30 = ssub.s32 %s25, 1
      %s31 = ssub.s32 %s25, 2
      %s41 = sadd.s32 1, %s34
      %p42 = scmp.ge.s32.totalorder %s41, 1
      %s43 = scalar_select %p42, 0, %s41
      %s44 = sadd.s32 1, %s33
      %s45 = scalar_select %p42, %s44, %s33
      %p46 = scmp.ge.s32.totalorder %s45, 1
      %s47 = scalar_select %p46, 0, %s45
      %s48 = sadd.s32 1, %s32
      %s49 = scalar_select %p46, %s48, %s32
      %p50 = scmp.ge.s32.totalorder %s49, 4
      %s51 = scalar_select %p50, 0, %s49
      %s53 = sadd.s32 %s52, 1
      %p56 = scmp.eq.s32.totalorder %s25, 3
      %p57 = scmp.ne.s32.totalorder %s52, %s54
      %p58 = scmp.eq.s32.totalorder %s25, 0
      %p59 = por %p57, %p58
      %p60 = scmp.ne.s32.totalorder %s52, %s54
      %p61 = scmp.eq.s32.totalorder %s30, 3
      %p62 = por %p60, %p61
      %p63 = scmp.ne.s32.totalorder %s54, %s55
      %p64 = scmp.eq.s32.totalorder %s30, 0
      %p65 = por %p63, %p64
      %p66 = scmp.ne.s32.totalorder %s54, %s55
      %p67 = scmp.eq.s32.totalorder %s31, 3
      %p68 = por %p66, %p67
      %p70 = scmp.ne.s32.totalorder %s55, %s69
      %p71 = scmp.eq.s32.totalorder %s31, 0
      %p72 = por %p70, %p71
      %s73 = ssub.s32 %s33, %s47
      %p74 = scmp.eq.s32.totalorder %s73, 0
      %s76 = sadd.s32 %s75, 1
      %s77 = scalar_select %p74, %s75, %s76
      %p80 = pneg %p74
      %p81 = scmp.eq.s32.totalorder %s25, 3
      %p82 = por %p80, %p81
      %p83 = scmp.ne.s32.totalorder %s75, %s78
      %p84 = scmp.eq.s32.totalorder %s25, 0
      %p85 = por %p83, %p84
      %p86 = scmp.ne.s32.totalorder %s75, %s78
      %p87 = scmp.eq.s32.totalorder %s30, 3
      %p88 = por %p86, %p87
      %p89 = scmp.ne.s32.totalorder %s78, %s79
      %p90 = scmp.eq.s32.totalorder %s30, 0
      %p91 = por %p89, %p90
      %p92 = scmp.ne.s32.totalorder %s78, %s79
      %p93 = scmp.eq.s32.totalorder %s31, 3
      %p94 = por %p92, %p93
      %p96 = scmp.ne.s32.totalorder %s79, %s95
      %p97 = scmp.eq.s32.totalorder %s31, 0
      %p98 = por %p96, %p97
      %s100 = sadd.s32 %s99, 1
      %p103 = scmp.eq.s32.totalorder %s25, 3
      %p104 = scmp.ne.s32.totalorder %s99, %s101
      %p105 = scmp.eq.s32.totalorder %s25, 0
      %p106 = por %p104, %p105
      %p107 = scmp.ne.s32.totalorder %s99, %s101
      %p108 = scmp.eq.s32.totalorder %s30, 3
      %p109 = por %p107, %p108
      %p110 = scmp.ne.s32.totalorder %s101, %s102
      %p111 = scmp.eq.s32.totalorder %s30, 0
      %p112 = por %p110, %p111
      %p113 = scmp.ne.s32.totalorder %s101, %s102
      %p114 = scmp.eq.s32.totalorder %s31, 3
      %p115 = por %p113, %p114
      %p117 = scmp.ne.s32.totalorder %s102, %s116
      %p118 = scmp.eq.s32.totalorder %s31, 0
      %p119 = por %p117, %p118
      %s120 = ssub.s32 %s32, %s51
      %p121 = scmp.eq.s32.totalorder %s120, 0
      %s123 = sadd.s32 %s122, 1
      %s124 = scalar_select %p121, %s122, %s123
      %p127 = pneg %p121
      %p128 = scmp.eq.s32.totalorder %s25, 3
      %p129 = por %p127, %p128
      %p130 = scmp.ne.s32.totalorder %s122, %s125
      %p131 = scmp.eq.s32.totalorder %s25, 0
      %p132 = por %p130, %p131
      %p133 = scmp.ne.s32.totalorder %s122, %s125
      %p134 = scmp.eq.s32.totalorder %s30, 3
      %p135 = por %p133, %p134
      %p136 = scmp.ne.s32.totalorder %s125, %s126
      %p137 = scmp.eq.s32.totalorder %s30, 0
      %p138 = por %p136, %p137
      %p139 = scmp.ne.s32.totalorder %s125, %s126
      %p140 = scmp.eq.s32.totalorder %s31, 3
      %p141 = por %p139, %p140
      %p143 = scmp.ne.s32.totalorder %s126, %s142
      %p144 = scmp.eq.s32.totalorder %s31, 0
      %p145 = por %p143, %p144
      %s146 = ssub.s32 %s32, %s51
      %p147 = scmp.eq.s32.totalorder %s146, 0
      %s149 = sadd.s32 %s148, 1
      %s150 = scalar_select %p147, %s148, %s149
      %p153 = pneg %p147
      %p154 = scmp.eq.s32.totalorder %s25, 3
      %p155 = por %p153, %p154
      %p156 = scmp.ne.s32.totalorder %s148, %s151
      %p157 = scmp.eq.s32.totalorder %s25, 0
      %p158 = por %p156, %p157
      %p159 = scmp.ne.s32.totalorder %s148, %s151
      %p160 = scmp.eq.s32.totalorder %s30, 3
      %p161 = por %p159, %p160
      %p162 = scmp.ne.s32.totalorder %s151, %s152
      %p163 = scmp.eq.s32.totalorder %s30, 0
      %p164 = por %p162, %p163
      %p165 = scmp.ne.s32.totalorder %s151, %s152
      %p166 = scmp.eq.s32.totalorder %s31, 3
      %p167 = por %p165, %p166
      %p169 = scmp.ne.s32.totalorder %s152, %s168
      %p170 = scmp.eq.s32.totalorder %s31, 0
      %p171 = por %p169, %p170
      %s173 = sadd.s32 %s172, 1
      %p176 = scmp.eq.s32.totalorder %s25, 3
      %p177 = scmp.ne.s32.totalorder %s172, %s174
      %p178 = scmp.eq.s32.totalorder %s25, 0
      %p179 = por %p177, %p178
      %p180 = scmp.ne.s32.totalorder %s172, %s174
      %p181 = scmp.eq.s32.totalorder %s30, 3
      %p182 = por %p180, %p181
      %p183 = scmp.ne.s32.totalorder %s174, %s175
      %p184 = scmp.eq.s32.totalorder %s30, 0
      %p185 = por %p183, %p184
      %p186 = scmp.ne.s32.totalorder %s174, %s175
      %p187 = scmp.eq.s32.totalorder %s31, 3
      %p188 = por %p186, %p187
      %p190 = scmp.ne.s32.totalorder %s175, %s189
      %p191 = scmp.eq.s32.totalorder %s31, 0
      %p192 = por %p190, %p191
      %s194 = sadd.s32 %s193, 1
      %p197 = scmp.eq.s32.totalorder %s25, 3
      %p198 = scmp.ne.s32.totalorder %s193, %s195
      %p199 = scmp.eq.s32.totalorder %s25, 0
      %p200 = por %p198, %p199
      %p201 = scmp.ne.s32.totalorder %s193, %s195
      %p202 = scmp.eq.s32.totalorder %s30, 3
      %p203 = por %p201, %p202
      %p204 = scmp.ne.s32.totalorder %s195, %s196
      %p205 = scmp.eq.s32.totalorder %s30, 0
      %p206 = por %p204, %p205
      %p207 = scmp.ne.s32.totalorder %s195, %s196
      %p208 = scmp.eq.s32.totalorder %s31, 3
      %p209 = por %p207, %p208
      %p211 = scmp.ne.s32.totalorder %s196, %s210
      %p212 = scmp.eq.s32.totalorder %s31, 0
      %p213 = por %p211, %p212
      %s215 = sadd.s32 %s214, 1
      %p218 = scmp.eq.s32.totalorder %s25, 3
      %p219 = scmp.ne.s32.totalorder %s214, %s216
      %p220 = scmp.eq.s32.totalorder %s25, 0
      %p221 = por %p219, %p220
      %p222 = scmp.ne.s32.totalorder %s214, %s216
      %p223 = scmp.eq.s32.totalorder %s30, 3
      %p224 = por %p222, %p223
      %p225 = scmp.ne.s32.totalorder %s216, %s217
      %p226 = scmp.eq.s32.totalorder %s30, 0
      %p227 = por %p225, %p226
      %p228 = scmp.ne.s32.totalorder %s216, %s217
      %p229 = scmp.eq.s32.totalorder %s31, 3
      %p230 = por %p228, %p229
      %p232 = scmp.ne.s32.totalorder %s217, %s231
      %p233 = scmp.eq.s32.totalorder %s31, 0
      %p234 = por %p232, %p233
      %s236 = sadd.s32 %s235, 1
      %p239 = scmp.eq.s32.totalorder %s25, 3
      %p240 = scmp.ne.s32.totalorder %s235, %s237
      %p241 = scmp.eq.s32.totalorder %s25, 0
      %p242 = por %p240, %p241
      %p243 = scmp.ne.s32.totalorder %s235, %s237
      %p244 = scmp.eq.s32.totalorder %s30, 3
      %p245 = por %p243, %p244
      %p246 = scmp.ne.s32.totalorder %s237, %s238
      %p247 = scmp.eq.s32.totalorder %s30, 0
      %p248 = por %p246, %p247
      %p249 = scmp.ne.s32.totalorder %s237, %s238
      %p250 = scmp.eq.s32.totalorder %s31, 3
      %p251 = por %p249, %p250
      %p253 = scmp.ne.s32.totalorder %s238, %s252
      %p254 = scmp.eq.s32.totalorder %s31, 0
      %p255 = por %p253, %p254
      %s257 = sadd.s32 %s256, 1
      %p260 = scmp.eq.s32.totalorder %s25, 3
      %p261 = scmp.ne.s32.totalorder %s256, %s258
      %p262 = scmp.eq.s32.totalorder %s25, 0
      %p263 = por %p261, %p262
      %p264 = scmp.ne.s32.totalorder %s256, %s258
      %p265 = scmp.eq.s32.totalorder %s30, 3
      %p266 = por %p264, %p265
      %p267 = scmp.ne.s32.totalorder %s258, %s259
      %p268 = scmp.eq.s32.totalorder %s30, 0
      %p269 = por %p267, %p268
      %p270 = scmp.ne.s32.totalorder %s258, %s259
      %p271 = scmp.eq.s32.totalorder %s31, 3
      %p272 = por %p270, %p271
      %p274 = scmp.ne.s32.totalorder %s259, %s273
      %p275 = scmp.eq.s32.totalorder %s31, 0
      %p276 = por %p274, %p275
      %s278 = sadd.s32 %s277, 1
      %p281 = scmp.eq.s32.totalorder %s25, 3
      %p282 = scmp.ne.s32.totalorder %s277, %s279
      %p283 = scmp.eq.s32.totalorder %s25, 0
      %p284 = por %p282, %p283
      %p285 = scmp.ne.s32.totalorder %s277, %s279
      %p286 = scmp.eq.s32.totalorder %s30, 3
      %p287 = por %p285, %p286
      %p288 = scmp.ne.s32.totalorder %s279, %s280
      %p289 = scmp.eq.s32.totalorder %s30, 0
      %p290 = por %p288, %p289
      %p291 = scmp.ne.s32.totalorder %s279, %s280
      %p292 = scmp.eq.s32.totalorder %s31, 3
      %p293 = por %p291, %p292
      %p295 = scmp.ne.s32.totalorder %s280, %s294
      %p296 = scmp.eq.s32.totalorder %s31, 0
      %p297 = por %p295, %p296
      %s299 = sadd.s32 %s298, 1
      %p302 = scmp.eq.s32.totalorder %s25, 3
      %p303 = scmp.ne.s32.totalorder %s298, %s300
      %p304 = scmp.eq.s32.totalorder %s25, 0
      %p305 = por %p303, %p304
      %p306 = scmp.ne.s32.totalorder %s298, %s300
      %p307 = scmp.eq.s32.totalorder %s30, 3
      %p308 = por %p306, %p307
      %p309 = scmp.ne.s32.totalorder %s300, %s301
      %p310 = scmp.eq.s32.totalorder %s30, 0
      %p311 = por %p309, %p310
      %p312 = scmp.ne.s32.totalorder %s300, %s301
      %p313 = scmp.eq.s32.totalorder %s31, 3
      %p314 = por %p312, %p313
      %p316 = scmp.ne.s32.totalorder %s301, %s315
      %p317 = scmp.eq.s32.totalorder %s31, 0
      %p318 = por %p316, %p317
      %p319 = scmp.le.s32.totalorder 1, %s25
      %p320 = scmp.lt.s32.totalorder %s25, 5
      %p321 = pnand %p319, %p320
      %p322 = pneg %p321
      // Predicated region
      $region9: #{tpu_custom_call.1} parent=5 // pred_check
        _
      $region10: #{tpu_custom_call.1} parent=5 // pred_check_branch
        %324 = sbr.rel (%p321) target = $region12
      $region11: #{tpu_custom_call.1} parent=5 // pred_region
        %s325 = ssub.s32 %s25, 1
        // Predicated region
        $region13: #{tpu_custom_call.1} parent=11 // pred_check
          %p326 = pneg %p65
        $region14: #{tpu_custom_call.1} parent=11 // pred_check_branch
          %328 = sbr.rel (%p326) target = $region16
        $region15: #{tpu_custom_call.1} parent=11 // pred_region
          %s330 = ssub.s32 4096, 4096
          %331 = vsyncadd [#allocation8], %s330
          %s332 = sshll.u32 [#allocation7], 4
          %s333 = int_to_ptr.vmem [resolvable:$true] %s332
          %338 = dma.hbm_to_vmem [thread:$0]  %s0, 4096, %s333, [#allocation8], 128, 128, 8
        $region16: #{tpu_custom_call.1} parent=11 // pred_fallthru
          _
        // Predicated region
        $region17: #{tpu_custom_call.1} parent=11 // pred_check
          %p339 = pneg %p91
        $region18: #{tpu_custom_call.1} parent=11 // pred_check_branch
          %341 = sbr.rel (%p339) target = $region20
        $region19: #{tpu_custom_call.1} parent=11 // pred_region
          %s342 = smul.u32 2, %s36
          %s344 = ssub.s32 256, 256
          %345 = vsyncadd [#allocation11], %s344
          %s346 = smul.addr %s342, 128
          %s347 = scalar_lea.hbm %s1, %s346
          %s349 = sshll.u32 [#allocation10], 4
          %s350 = int_to_ptr.vmem [resolvable:$true] %s349
          %352 = dma.hbm_to_vmem [thread:$0]  %s347, 256, %s350, [#allocation11]
        $region20: #{tpu_custom_call.1} parent=11 // pred_fallthru
          _
        // Predicated region
        $region21: #{tpu_custom_call.1} parent=11 // pred_check
          %p353 = pneg %p112
        $region22: #{tpu_custom_call.1} parent=11 // pred_check_branch
          %355 = sbr.rel (%p353) target = $region24
        $region23: #{tpu_custom_call.1} parent=11 // pred_region
          %s357 = ssub.s32 4096, 4096
          %358 = vsyncadd [#allocation11], %s357
          %s359 = sshll.u32 [#allocation12], 4
          %s360 = int_to_ptr.vmem [resolvable:$true] %s359
          %365 = dma.hbm_to_vmem [thread:$0]  %s2, 4096, %s360, [#allocation11], 128, 128, 8
        $region24: #{tpu_custom_call.1} parent=11 // pred_fallthru
          _
        // Predicated region
        $region25: #{tpu_custom_call.1} parent=11 // pred_check
          %p366 = pneg %p185
        $region26: #{tpu_custom_call.1} parent=11 // pred_check_branch
          %368 = sbr.rel (%p366) target = $region28
        $region27: #{tpu_custom_call.1} parent=11 // pred_region
          %s370 = ssub.s32 2048, 2048
          %371 = vsyncadd [#allocation14], %s370
          %s372 = sshll.u32 [#allocation15], 4
          %s373 = int_to_ptr.vmem [resolvable:$true] %s372
          %378 = dma.hbm_to_vmem [thread:$0]  %s5, 2048, %s373, [#allocation14], 128, 128, 8
        $region28: #{tpu_custom_call.1} parent=11 // pred_fallthru
          _
        // Predicated region
        $region29: #{tpu_custom_call.1} parent=11 // pred_check
          %p379 = pneg %p206
        $region30: #{tpu_custom_call.1} parent=11 // pred_check_branch
          %381 = sbr.rel (%p379) target = $region32
        $region31: #{tpu_custom_call.1} parent=11 // pred_region
          _
        $region32: #{tpu_custom_call.1} parent=11 // pred_fallthru
          _
        // Predicated region
        $region33: #{tpu_custom_call.1} parent=11 // pred_check
          %p382 = pneg %p227
        $region34: #{tpu_custom_call.1} parent=11 // pred_check_branch
          %384 = sbr.rel (%p382) target = $region36
        $region35: #{tpu_custom_call.1} parent=11 // pred_region
          %s386 = ssub.s32 2048, 2048
          %387 = vsyncadd [#allocation17], %s386
          %s388 = sshll.u32 [#allocation16], 4
          %s389 = int_to_ptr.vmem [resolvable:$true] %s388
          %394 = dma.hbm_to_vmem [thread:$0]  %s7, 2048, %s389, [#allocation17], 128, 128, 8
        $region36: #{tpu_custom_call.1} parent=11 // pred_fallthru
          _
        // Predicated region
        $region37: #{tpu_custom_call.1} parent=11 // pred_check
          %p395 = pneg %p248
        $region38: #{tpu_custom_call.1} parent=11 // pred_check_branch
          %397 = sbr.rel (%p395) target = $region40
        $region39: #{tpu_custom_call.1} parent=11 // pred_region
          _
        $region40: #{tpu_custom_call.1} parent=11 // pred_fallthru
          _
        // Predicated region
        $region41: #{tpu_custom_call.1} parent=11 // pred_check
          %p398 = pneg %p269
        $region42: #{tpu_custom_call.1} parent=11 // pred_check_branch
          %400 = sbr.rel (%p398) target = $region44
        $region43: #{tpu_custom_call.1} parent=11 // pred_region
          _
        $region44: #{tpu_custom_call.1} parent=11 // pred_fallthru
          _
        // Predicated region
        $region45: #{tpu_custom_call.1} parent=11 // pred_check
          %p401 = pneg %p290
        $region46: #{tpu_custom_call.1} parent=11 // pred_check_branch
          %403 = sbr.rel (%p401) target = $region48
        $region47: #{tpu_custom_call.1} parent=11 // pred_region
          _
        $region48: #{tpu_custom_call.1} parent=11 // pred_fallthru
          _
      $region12: #{tpu_custom_call.1} parent=5 // pred_fallthru
        _
      %p404 = scmp.lt.s32.totalorder %s25, 4
      // Predicated region
      $region49: #{tpu_custom_call.1} parent=5 // pred_check
        %p405 = pneg %p404
      $region50: #{tpu_custom_call.1} parent=5 // pred_check_branch
        %407 = sbr.rel (%p405) target = $region52
      $region51: #{tpu_custom_call.1} parent=5 // pred_region
        // Predicated region
        $region53: #{tpu_custom_call.1} parent=51 // pred_check
          %p408 = pneg %p132
        $region54: #{tpu_custom_call.1} parent=51 // pred_check_branch
          %410 = sbr.rel (%p408) target = $region56
        $region55: #{tpu_custom_call.1} parent=51 // pred_region
          %s411 = sand.u32 %s25, 1
          %s412 = scalar_lea.sflag [#allocation14], %s411
          %s413 = sand.u32 %s122, 1
          %s414 = smul.addr %s413, 128
          %s415 = scalar_lea.vmem [#allocation13], %s414
          %s417 = ssub.s32 2048, 2048
          %418 = vsyncadd %s412, %s417
          %s419 = smul.addr %s32, 16
          %s420 = smul.addr %s419, 128
          %s421 = scalar_lea.hbm %s3, %s420
          %s422 = sshll.u32 %s415, 4
          %s423 = int_to_ptr.vmem [resolvable:$true] %s422
          %428 = dma.hbm_to_vmem [thread:$0]  %s421, 2048, %s423, %s412, 128, 128, 8
        $region56: #{tpu_custom_call.1} parent=51 // pred_fallthru
          _
        // Predicated region
        $region57: #{tpu_custom_call.1} parent=51 // pred_check
          %p429 = pneg %p158
        $region58: #{tpu_custom_call.1} parent=51 // pred_check_branch
          %431 = sbr.rel (%p429) target = $region60
        $region59: #{tpu_custom_call.1} parent=51 // pred_region
          %p432 = scmp.lt.s32.totalorder %s32, 3
          %s433 = scalar_select %p432, %s32, 3
          %s434 = scalar_lea.vmem %s4, %s433
        $region60: #{tpu_custom_call.1} parent=51 // pred_fallthru
          _
      $region52: #{tpu_custom_call.1} parent=5 // pred_fallthru
        _
      %p435 = scmp.le.s32.totalorder 1, %s25
      %p436 = scmp.lt.s32.totalorder %s25, 5
      %p437 = pnand %p435, %p436
      %p438 = pneg %p437
      // Predicated region
      $region61: #{tpu_custom_call.1} parent=5 // pred_check
        _
      $region62: #{tpu_custom_call.1} parent=5 // pred_check_branch
        %440 = sbr.rel (%p437) target = $region64
      $region63: #{tpu_custom_call.1} parent=5 // pred_region
        %s441 = ssub.s32 %s25, 1
        // Predicated region
        $region65: #{tpu_custom_call.1} parent=63 // pred_check
          %p442 = pneg %p65
        $region66: #{tpu_custom_call.1} parent=63 // pred_check_branch
          %444 = sbr.rel (%p442) target = $region68
        $region67: #{tpu_custom_call.1} parent=63 // pred_region
          %445 = dma.done [#allocation8], 4096
        $region68: #{tpu_custom_call.1} parent=63 // pred_fallthru
          _
        // Predicated region
        $region69: #{tpu_custom_call.1} parent=63 // pred_check
          %p446 = pneg %p91
        $region70: #{tpu_custom_call.1} parent=63 // pred_check_branch
          %448 = sbr.rel (%p446) target = $region72
        $region71: #{tpu_custom_call.1} parent=63 // pred_region
          %449 = dma.done [#allocation11], 256
        $region72: #{tpu_custom_call.1} parent=63 // pred_fallthru
          _
        // Predicated region
        $region73: #{tpu_custom_call.1} parent=63 // pred_check
          %p450 = pneg %p112
        $region74: #{tpu_custom_call.1} parent=63 // pred_check_branch
          %452 = sbr.rel (%p450) target = $region76
        $region75: #{tpu_custom_call.1} parent=63 // pred_region
          %453 = dma.done [#allocation11], 4096
        $region76: #{tpu_custom_call.1} parent=63 // pred_fallthru
          _
        %s454 = sand.u32 %s30, 1
        %s455 = scalar_lea.sflag [#allocation14], %s454
        %s456 = sand.u32 %s125, 1
        %s457 = smul.addr %s456, 128
        %s458 = scalar_lea.vmem [#allocation13], %s457
        // Predicated region
        $region77: #{tpu_custom_call.1} parent=63 // pred_check
          %p459 = pneg %p138
        $region78: #{tpu_custom_call.1} parent=63 // pred_check_branch
          %461 = sbr.rel (%p459) target = $region80
        $region79: #{tpu_custom_call.1} parent=63 // pred_region
          %462 = dma.done %s455, 2048
        $region80: #{tpu_custom_call.1} parent=63 // pred_fallthru
          _
        // Predicated region
        $region81: #{tpu_custom_call.1} parent=63 // pred_check
          %p463 = pneg %p185
        $region82: #{tpu_custom_call.1} parent=63 // pred_check_branch
          %465 = sbr.rel (%p463) target = $region84
        $region83: #{tpu_custom_call.1} parent=63 // pred_region
          %466 = dma.done [#allocation14], 2048
        $region84: #{tpu_custom_call.1} parent=63 // pred_fallthru
          _
        // Predicated region
        $region85: #{tpu_custom_call.1} parent=63 // pred_check
          %p467 = pneg %p227
        $region86: #{tpu_custom_call.1} parent=63 // pred_check_branch
          %469 = sbr.rel (%p467) target = $region88
        $region87: #{tpu_custom_call.1} parent=63 // pred_region
          %470 = dma.done [#allocation17], 2048
        $region88: #{tpu_custom_call.1} parent=63 // pred_fallthru
          _
        %p471 = pneg %p65
        %p472 = pneg %p62
        %p473 = pneg %p91
        %p474 = pneg %p88
        %p475 = pneg %p112
        %p476 = pneg %p109
        %s477 = sand.u32 %s30, 1
        %s478 = scalar_lea.sflag [#allocation14], %s477
        %s479 = sand.u32 %s125, 1
        %s480 = smul.addr %s479, 128
        %s481 = scalar_lea.vmem [#allocation13], %s480
        %p482 = pneg %p138
        %p483 = pneg %p135
        %p484 = scmp.lt.s32.totalorder %s35, 3
        %s485 = scalar_select %p484, %s35, 3
        %s486 = scalar_lea.vmem %s4, %s485
        %p487 = pneg %p164
        %p488 = pneg %p161
        %p489 = pneg %p185
        %p490 = pneg %p182
        %p491 = pneg %p206
        %p492 = pneg %p203
        %p493 = pneg %p227
        %p494 = pneg %p224
        %p495 = pneg %p248
        %p496 = pneg %p245
        %p497 = pneg %p269
        %p498 = pneg %p266
        %p499 = pneg %p290
        %p500 = pneg %p287
        %p501 = pneg %p311
        %p502 = pneg %p308
        %s503 = smul.u32 2, %s36
        %p504 = scmp.lt.s32.totalorder %s35, 3
        %s505 = scalar_select %p504, %s35, 3
        %s506 = scalar_lea.vmem %s4, %s505
        %s508 = smul.u32 %s36, 256
        %s509 = smul.u32 %s37, 256
        %p510 = scmp.eq.s32.totalorder %s36, 0
        %p511 = scmp.eq.s32.totalorder %s37, 0
        %p512 = pnand %p510, %p511
        %p513 = pneg %p512
        // Predicated region
        $region89: #{tpu_custom_call.1} parent=63 // pred_check
          _
        $region90: #{tpu_custom_call.1} parent=63 // pred_check_branch
          %515 = sbr.rel (%p512) target = $region92
        $region91: #{tpu_custom_call.1} parent=63 // pred_region
          %p516 = scmp.eq.s32.totalorder %s35, 0
          // Predicated region
          $region93: #{tpu_custom_call.1} parent=91 // pred_check
            %p517 = pneg %p516
          $region94: #{tpu_custom_call.1} parent=91 // pred_check_branch
            %519 = sbr.rel (%p517) target = $region96
          $region95: #{tpu_custom_call.1} parent=91 // pred_region
            %v520 = vld [vmem:[#allocation7] sm:$0xff]
            %v521 = vld [vmem:[#allocation7 + $0x8] sm:$0xff]
            %v522 = vld [vmem:[#allocation7 + $0x10] sm:$0xff]
            %v523 = vld [vmem:[#allocation7 + $0x18] sm:$0xff]
            %v524 = vld [vmem:[#allocation7 + $0x20] sm:$0xff]
            %v525 = vld [vmem:[#allocation7 + $0x28] sm:$0xff]
            %v526 = vld [vmem:[#allocation7 + $0x30] sm:$0xff]
            %v527 = vld [vmem:[#allocation7 + $0x38] sm:$0xff]
            %v528 = vld [vmem:[#allocation7 + $0x40] sm:$0xff]
            %v529 = vld [vmem:[#allocation7 + $0x48] sm:$0xff]
            %v530 = vld [vmem:[#allocation7 + $0x50] sm:$0xff]
            %v531 = vld [vmem:[#allocation7 + $0x58] sm:$0xff]
            %v532 = vld [vmem:[#allocation7 + $0x60] sm:$0xff]
            %v533 = vld [vmem:[#allocation7 + $0x68] sm:$0xff]
            %v534 = vld [vmem:[#allocation7 + $0x70] sm:$0xff]
            %v535 = vld [vmem:[#allocation7 + $0x78] sm:$0xff]
            %v536 = vld [vmem:[#allocation7 + $0x80] sm:$0xff]
            %v537 = vld [vmem:[#allocation7 + $0x88] sm:$0xff]
            %v538 = vld [vmem:[#allocation7 + $0x90] sm:$0xff]
            %v539 = vld [vmem:[#allocation7 + $0x98] sm:$0xff]
            %v540 = vld [vmem:[#allocation7 + $0xa0] sm:$0xff]
            %v541 = vld [vmem:[#allocation7 + $0xa8] sm:$0xff]
            %v542 = vld [vmem:[#allocation7 + $0xb0] sm:$0xff]
            %v543 = vld [vmem:[#allocation7 + $0xb8] sm:$0xff]
            %v544 = vld [vmem:[#allocation7 + $0xc0] sm:$0xff]
            %v545 = vld [vmem:[#allocation7 + $0xc8] sm:$0xff]
            %v546 = vld [vmem:[#allocation7 + $0xd0] sm:$0xff]
            %v547 = vld [vmem:[#allocation7 + $0xd8] sm:$0xff]
            %v548 = vld [vmem:[#allocation7 + $0xe0] sm:$0xff]
            %v549 = vld [vmem:[#allocation7 + $0xe8] sm:$0xff]
            %v550 = vld [vmem:[#allocation7 + $0xf0] sm:$0xff]
            %v551 = vld [vmem:[#allocation7 + $0xf8] sm:$0xff]
            %552 = vst [vmem:[#allocation2] sm:$0xff] %v520
            %553 = vst [vmem:[#allocation2 + $0x8] sm:$0xff] %v521
            %554 = vst [vmem:[#allocation2 + $0x10] sm:$0xff] %v522
            %555 = vst [vmem:[#allocation2 + $0x18] sm:$0xff] %v523
            %556 = vst [vmem:[#allocation2 + $0x20] sm:$0xff] %v524
            %557 = vst [vmem:[#allocation2 + $0x28] sm:$0xff] %v525
            %558 = vst [vmem:[#allocation2 + $0x30] sm:$0xff] %v526
            %559 = vst [vmem:[#allocation2 + $0x38] sm:$0xff] %v527
            %560 = vst [vmem:[#allocation2 + $0x40] sm:$0xff] %v528
            %561 = vst [vmem:[#allocation2 + $0x48] sm:$0xff] %v529
            %562 = vst [vmem:[#allocation2 + $0x50] sm:$0xff] %v530
            %563 = vst [vmem:[#allocation2 + $0x58] sm:$0xff] %v531
            %564 = vst [vmem:[#allocation2 + $0x60] sm:$0xff] %v532
            %565 = vst [vmem:[#allocation2 + $0x68] sm:$0xff] %v533
            %566 = vst [vmem:[#allocation2 + $0x70] sm:$0xff] %v534
            %567 = vst [vmem:[#allocation2 + $0x78] sm:$0xff] %v535
            %568 = vst [vmem:[#allocation2 + $0x80] sm:$0xff] %v536
            %569 = vst [vmem:[#allocation2 + $0x88] sm:$0xff] %v537
            %570 = vst [vmem:[#allocation2 + $0x90] sm:$0xff] %v538
            %571 = vst [vmem:[#allocation2 + $0x98] sm:$0xff] %v539
            %572 = vst [vmem:[#allocation2 + $0xa0] sm:$0xff] %v540
            %573 = vst [vmem:[#allocation2 + $0xa8] sm:$0xff] %v541
            %574 = vst [vmem:[#allocation2 + $0xb0] sm:$0xff] %v542
            %575 = vst [vmem:[#allocation2 + $0xb8] sm:$0xff] %v543
            %576 = vst [vmem:[#allocation2 + $0xc0] sm:$0xff] %v544
            %577 = vst [vmem:[#allocation2 + $0xc8] sm:$0xff] %v545
            %578 = vst [vmem:[#allocation2 + $0xd0] sm:$0xff] %v546
            %579 = vst [vmem:[#allocation2 + $0xd8] sm:$0xff] %v547
            %580 = vst [vmem:[#allocation2 + $0xe0] sm:$0xff] %v548
            %581 = vst [vmem:[#allocation2 + $0xe8] sm:$0xff] %v549
            %582 = vst [vmem:[#allocation2 + $0xf0] sm:$0xff] %v550
            %583 = vst [vmem:[#allocation2 + $0xf8] sm:$0xff] %v551
          $region96: #{tpu_custom_call.1} parent=91 // pred_fallthru
            _
          %v584 = vld [vmem:[#allocation2] sm:$0xff]
          %v585 = vld [vmem:[#allocation2 + $0x8] sm:$0xff]
          %v586 = vld [vmem:[#allocation2 + $0x10] sm:$0xff]
          %v587 = vld [vmem:[#allocation2 + $0x18] sm:$0xff]
          %v588 = vld [vmem:[#allocation2 + $0x20] sm:$0xff]
          %v589 = vld [vmem:[#allocation2 + $0x28] sm:$0xff]
          %v590 = vld [vmem:[#allocation2 + $0x30] sm:$0xff]
          %v591 = vld [vmem:[#allocation2 + $0x38] sm:$0xff]
          %v592 = vld [vmem:[#allocation2 + $0x40] sm:$0xff]
          %v593 = vld [vmem:[#allocation2 + $0x48] sm:$0xff]
          %v594 = vld [vmem:[#allocation2 + $0x50] sm:$0xff]
          %v595 = vld [vmem:[#allocation2 + $0x58] sm:$0xff]
          %v596 = vld [vmem:[#allocation2 + $0x60] sm:$0xff]
          %v597 = vld [vmem:[#allocation2 + $0x68] sm:$0xff]
          %v598 = vld [vmem:[#allocation2 + $0x70] sm:$0xff]
          %v599 = vld [vmem:[#allocation2 + $0x78] sm:$0xff]
          %v600 = vld [vmem:[#allocation2 + $0x80] sm:$0xff]
          %v601 = vld [vmem:[#allocation2 + $0x88] sm:$0xff]
          %v602 = vld [vmem:[#allocation2 + $0x90] sm:$0xff]
          %v603 = vld [vmem:[#allocation2 + $0x98] sm:$0xff]
          %v604 = vld [vmem:[#allocation2 + $0xa0] sm:$0xff]
          %v605 = vld [vmem:[#allocation2 + $0xa8] sm:$0xff]
          %v606 = vld [vmem:[#allocation2 + $0xb0] sm:$0xff]
          %v607 = vld [vmem:[#allocation2 + $0xb8] sm:$0xff]
          %v608 = vld [vmem:[#allocation2 + $0xc0] sm:$0xff]
          %v609 = vld [vmem:[#allocation2 + $0xc8] sm:$0xff]
          %v610 = vld [vmem:[#allocation2 + $0xd0] sm:$0xff]
          %v611 = vld [vmem:[#allocation2 + $0xd8] sm:$0xff]
          %v612 = vld [vmem:[#allocation2 + $0xe0] sm:$0xff]
          %v613 = vld [vmem:[#allocation2 + $0xe8] sm:$0xff]
          %v614 = vld [vmem:[#allocation2 + $0xf0] sm:$0xff]
          %v615 = vld [vmem:[#allocation2 + $0xf8] sm:$0xff]
          %v616 = vld [vmem:[%s458] sm:$0xff]
          %v617 = vld [vmem:[%s458 + $0x8] sm:$0xff]
          %v618 = vld [vmem:[%s458 + $0x10] sm:$0xff]
          %v619 = vld [vmem:[%s458 + $0x18] sm:$0xff]
          %v620 = vld [vmem:[%s458 + $0x20] sm:$0xff]
          %v621 = vld [vmem:[%s458 + $0x28] sm:$0xff]
          %v622 = vld [vmem:[%s458 + $0x30] sm:$0xff]
          %v623 = vld [vmem:[%s458 + $0x38] sm:$0xff]
          %v624 = vld [vmem:[%s458 + $0x40] sm:$0xff]
          %v625 = vld [vmem:[%s458 + $0x48] sm:$0xff]
          %v626 = vld [vmem:[%s458 + $0x50] sm:$0xff]
          %v627 = vld [vmem:[%s458 + $0x58] sm:$0xff]
          %v628 = vld [vmem:[%s458 + $0x60] sm:$0xff]
          %v629 = vld [vmem:[%s458 + $0x68] sm:$0xff]
          %v630 = vld [vmem:[%s458 + $0x70] sm:$0xff]
          %v631 = vld [vmem:[%s458 + $0x78] sm:$0xff]
          %632 = vmatprep.subr.mxu0 0.0
          %633 = vmatpush1.msra.mxu0 %v616
          %634 = vmatprep.subr.mxu0 0.0
          %635 = vmatpush1.msra.mxu0 %v617
          %636 = vmatprep.subr.mxu0 0.0
          %637 = vmatpush1.msra.mxu0 %v618
          %638 = vmatprep.subr.mxu0 0.0
          %639 = vmatpush1.msra.mxu0 %v619
          %640 = vmatprep.subr.mxu0 0.0
          %641 = vmatpush1.msra.mxu0 %v620
          %642 = vmatprep.subr.mxu0 0.0
          %643 = vmatpush1.msra.mxu0 %v621
          %644 = vmatprep.subr.mxu0 0.0
          %645 = vmatpush1.msra.mxu0 %v622
          %646 = vmatprep.subr.mxu0 0.0
          %647 = vmatpush1.msra.mxu0 %v623
          %648 = vmatprep.subr.mxu0 0.0
          %649 = vmatpush1.msra.mxu0 %v624
          %650 = vmatprep.subr.mxu0 0.0
          %651 = vmatpush1.msra.mxu0 %v625
          %652 = vmatprep.subr.mxu0 0.0
          %653 = vmatpush1.msra.mxu0 %v626
          %654 = vmatprep.subr.mxu0 0.0
          %655 = vmatpush1.msra.mxu0 %v627
          %656 = vmatprep.subr.mxu0 0.0
          %657 = vmatpush1.msra.mxu0 %v628
          %658 = vmatprep.subr.mxu0 0.0
          %659 = vmatpush1.msra.mxu0 %v629
          %660 = vmatprep.subr.mxu0 0.0
          %661 = vmatpush1.msra.mxu0 %v630
          %662 = vmatprep.subr.mxu0 0.0
          %663 = vmatpush1.msra.mxu0 %v631
          %664 = vmatprep.subr.mxu0 0.0
          %665 = vmatpush1.msra.mxu0 0.0
          %666 = vmatprep.subr.mxu0 0.0
          %667 = vmatpush1.msra.mxu0 0.0
          %668 = vmatprep.subr.mxu0 0.0
          %669 = vmatpush1.msra.mxu0 0.0
          %670 = vmatprep.subr.mxu0 0.0
          %671 = vmatpush1.msra.mxu0 0.0
          %672 = vmatprep.subr.mxu0 0.0
          %673 = vmatpush1.msra.mxu0 0.0
          %674 = vmatprep.subr.mxu0 0.0
          %675 = vmatpush1.msra.mxu0 0.0
          %676 = vmatprep.subr.mxu0 0.0
          %677 = vmatpush1.msra.mxu0 0.0
          %678 = vmatprep.subr.mxu0 0.0
          %679 = vmatpush1.msra.mxu0 0.0
          %680 = vmatprep.subr.mxu0 0.0
          %681 = vmatpush1.msra.mxu0 0.0
          %682 = vmatprep.subr.mxu0 0.0
          %683 = vmatpush1.msra.mxu0 0.0
          %684 = vmatprep.subr.mxu0 0.0
          %685 = vmatpush1.msra.mxu0 0.0
          %686 = vmatprep.subr.mxu0 0.0
          %687 = vmatpush1.msra.mxu0 0.0
          %688 = vmatprep.subr.mxu0 0.0
          %689 = vmatpush1.msra.mxu0 0.0
          %690 = vmatprep.subr.mxu0 0.0
          %691 = vmatpush1.msra.mxu0 0.0
          %692 = vmatprep.subr.mxu0 0.0
          %693 = vmatpush1.msra.mxu0 0.0
          %694 = vmatprep.subr.mxu0 0.0
          %695 = vmatpush1.msra.mxu0 0.0
          %696 = vmatprep.mubr.f32.mxu0 0.0
          %697 = vmatmul.mubr.f32.gmra.mrb[0].mxu0 %v584
          %v698 = vpop.f32.mrb[0].mxu0
          %v699 = vadd.f32 0.0, %v698
          %v700 = vpop.f32.mrb[0].mxu0
          %701 = vmatprep.mubr.f32.mxu0 0.0
          %702 = vmatmul.mubr.f32.gmra.mrb[0].mxu0 %v585
          %v703 = vpop.f32.mrb[0].mxu0
          %v704 = vadd.f32 0.0, %v703
          %v705 = vpop.f32.mrb[0].mxu0
          %706 = vmatprep.mubr.f32.mxu0 0.0
          %707 = vmatmul.mubr.f32.gmra.mrb[0].mxu0 %v586
          %v708 = vpop.f32.mrb[0].mxu0
          %v709 = vadd.f32 0.0, %v708
          %v710 = vpop.f32.mrb[0].mxu0
          %711 = vmatprep.mubr.f32.mxu0 0.0
          %712 = vmatmul.mubr.f32.gmra.mrb[0].mxu0 %v587
          %v713 = vpop.f32.mrb[0].mxu0
          %v714 = vadd.f32 0.0, %v713
          %v715 = vpop.f32.mrb[0].mxu0
          %716 = vmatprep.mubr.f32.mxu0 0.0
          %717 = vmatmul.mubr.f32.gmra.mrb[0].mxu0 %v588
          %v718 = vpop.f32.mrb[0].mxu0
          %v719 = vadd.f32 0.0, %v718
          %v720 = vpop.f32.mrb[0].mxu0
          %721 = vmatprep.mubr.f32.mxu0 0.0
          %722 = vmatmul.mubr.f32.gmra.mrb[0].mxu0 %v589
          %v723 = vpop.f32.mrb[0].mxu0
          %v724 = vadd.f32 0.0, %v723
          %v725 = vpop.f32.mrb[0].mxu0
          %726 = vmatprep.mubr.f32.mxu0 0.0
          %727 = vmatmul.mubr.f32.gmra.mrb[0].mxu0 %v590
          %v728 = vpop.f32.mrb[0].mxu0
          %v729 = vadd.f32 0.0, %v728
          %v730 = vpop.f32.mrb[0].mxu0
          %731 = vmatprep.mubr.f32.mxu0 0.0
          %732 = vmatmul.mubr.f32.gmra.mrb[0].mxu0 %v591
          %v733 = vpop.f32.mrb[0].mxu0
          %v734 = vadd.f32 0.0, %v733
          %v735 = vpop.f32.mrb[0].mxu0
          %736 = vmatprep.mubr.f32.mxu0 0.0
          %737 = vmatmul.mubr.f32.gmra.mrb[0].mxu0 %v592
          %v738 = vpop.f32.mrb[0].mxu0
          %v739 = vadd.f32 0.0, %v738
          %v740 = vpop.f32.mrb[0].mxu0
          %741 = vmatprep.mubr.f32.mxu0 0.0
          %742 = vmatmul.mubr.f32.gmra.mrb[0].mxu0 %v593
          %v743 = vpop.f32.mrb[0].mxu0
          %v744 = vadd.f32 0.0, %v743
          %v745 = vpop.f32.mrb[0].mxu0
          %746 = vmatprep.mubr.f32.mxu0 0.0
          %747 = vmatmul.mubr.f32.gmra.mrb[0].mxu0 %v594
          %v748 = vpop.f32.mrb[0].mxu0
          %v749 = vadd.f32 0.0, %v748
          %v750 = vpop.f32.mrb[0].mxu0
          %751 = vmatprep.mubr.f32.mxu0 0.0
          %752 = vmatmul.mubr.f32.gmra.mrb[0].mxu0 %v595
          %v753 = vpop.f32.mrb[0].mxu0
          %v754 = vadd.f32 0.0, %v753
          %v755 = vpop.f32.mrb[0].mxu0
          %756 = vmatprep.mubr.f32.mxu0 0.0
          %757 = vmatmul.mubr.f32.gmra.mrb[0].mxu0 %v596
          %v758 = vpop.f32.mrb[0].mxu0
          %v759 = vadd.f32 0.0, %v758
          %v760 = vpop.f32.mrb[0].mxu0
          %761 = vmatprep.mubr.f32.mxu0 0.0
          %762 = vmatmul.mubr.f32.gmra.mrb[0].mxu0 %v597
          %v763 = vpop.f32.mrb[0].mxu0
          %v764 = vadd.f32 0.0, %v763
          %v765 = vpop.f32.mrb[0].mxu0
          %766 = vmatprep.mubr.f32.mxu0 0.0
          %767 = vmatmul.mubr.f32.gmra.mrb[0].mxu0 %v598
          %v768 = vpop.f32.mrb[0].mxu0
          %v769 = vadd.f32 0.0, %v768
          %v770 = vpop.f32.mrb[0].mxu0
          %771 = vmatprep.mubr.f32.mxu0 0.0
          %772 = vmatmul.mubr.f32.gmra.mrb[0].mxu0 %v599
          %v773 = vpop.f32.mrb[0].mxu0
          %v774 = vadd.f32 0.0, %v773
          %v775 = vpop.f32.mrb[0].mxu0
          %776 = vmatprep.mubr.f32.mxu0 0.0
          %777 = vmatmul.mubr.f32.gmra.mrb[0].mxu0 %v600
          %v778 = vpop.f32.mrb[0].mxu0
          %v779 = vadd.f32 0.0, %v778
          %v780 = vpop.f32.mrb[0].mxu0
          %781 = vmatprep.mubr.f32.mxu0 0.0
          %782 = vmatmul.mubr.f32.gmra.mrb[0].mxu0 %v601
          %v783 = vpop.f32.mrb[0].mxu0
          %v784 = vadd.f32 0.0, %v783
          %v785 = vpop.f32.mrb[0].mxu0
          %786 = vmatprep.mubr.f32.mxu0 0.0
          %787 = vmatmul.mubr.f32.gmra.mrb[0].mxu0 %v602
          %v788 = vpop.f32.mrb[0].mxu0
          %v789 = vadd.f32 0.0, %v788
          %v790 = vpop.f32.mrb[0].mxu0
          %791 = vmatprep.mubr.f32.mxu0 0.0
          %792 = vmatmul.mubr.f32.gmra.mrb[0].mxu0 %v603
          %v793 = vpop.f32.mrb[0].mxu0
          %v794 = vadd.f32 0.0, %v793
          %v795 = vpop.f32.mrb[0].mxu0
          %796 = vmatprep.mubr.f32.mxu0 0.0
          %797 = vmatmul.mubr.f32.gmra.mrb[0].mxu0 %v604
          %v798 = vpop.f32.mrb[0].mxu0
          %v799 = vadd.f32 0.0, %v798
          %v800 = vpop.f32.mrb[0].mxu0
          %801 = vmatprep.mubr.f32.mxu0 0.0
          %802 = vmatmul.mubr.f32.gmra.mrb[0].mxu0 %v605
          %v803 = vpop.f32.mrb[0].mxu0
          %v804 = vadd.f32 0.0, %v803
          %v805 = vpop.f32.mrb[0].mxu0
          %806 = vmatprep.mubr.f32.mxu0 0.0
          %807 = vmatmul.mubr.f32.gmra.mrb[0].mxu0 %v606
          %v808 = vpop.f32.mrb[0].mxu0
          %v809 = vadd.f32 0.0, %v808
          %v810 = vpop.f32.mrb[0].mxu0
          %811 = vmatprep.mubr.f32.mxu0 0.0
          %812 = vmatmul.mubr.f32.gmra.mrb[0].mxu0 %v607
          %v813 = vpop.f32.mrb[0].mxu0
          %v814 = vadd.f32 0.0, %v813
          %v815 = vpop.f32.mrb[0].mxu0
          %816 = vmatprep.mubr.f32.mxu0 0.0
          %817 = vmatmul.mubr.f32.gmra.mrb[0].mxu0 %v608
          %v818 = vpop.f32.mrb[0].mxu0
          %v819 = vadd.f32 0.0, %v818
          %v820 = vpop.f32.mrb[0].mxu0
          %821 = vmatprep.mubr.f32.mxu0 0.0
          %822 = vmatmul.mubr.f32.gmra.mrb[0].mxu0 %v609
          %v823 = vpop.f32.mrb[0].mxu0
          %v824 = vadd.f32 0.0, %v823
          %v825 = vpop.f32.mrb[0].mxu0
          %826 = vmatprep.mubr.f32.mxu0 0.0
          %827 = vmatmul.mubr.f32.gmra.mrb[0].mxu0 %v610
          %v828 = vpop.f32.mrb[0].mxu0
          %v829 = vadd.f32 0.0, %v828
          %v830 = vpop.f32.mrb[0].mxu0
          %831 = vmatprep.mubr.f32.mxu0 0.0
          %832 = vmatmul.mubr.f32.gmra.mrb[0].mxu0 %v611
          %v833 = vpop.f32.mrb[0].mxu0
          %v834 = vadd.f32 0.0, %v833
          %v835 = vpop.f32.mrb[0].mxu0
          %836 = vmatprep.mubr.f32.mxu0 0.0
          %837 = vmatmul.mubr.f32.gmra.mrb[0].mxu0 %v612
          %v838 = vpop.f32.mrb[0].mxu0
          %v839 = vadd.f32 0.0, %v838
          %v840 = vpop.f32.mrb[0].mxu0
          %841 = vmatprep.mubr.f32.mxu0 0.0
          %842 = vmatmul.mubr.f32.gmra.mrb[0].mxu0 %v613
          %v843 = vpop.f32.mrb[0].mxu0
          %v844 = vadd.f32 0.0, %v843
          %v845 = vpop.f32.mrb[0].mxu0
          %846 = vmatprep.mubr.f32.mxu0 0.0
          %847 = vmatmul.mubr.f32.gmra.mrb[0].mxu0 %v614
          %v848 = vpop.f32.mrb[0].mxu0
          %v849 = vadd.f32 0.0, %v848
          %v850 = vpop.f32.mrb[0].mxu0
          %851 = vmatprep.mubr.f32.mxu0 0.0
          %852 = vmatmul.mubr.f32.gmra.mrb[0].mxu0 %v615
          %v853 = vpop.f32.mrb[0].mxu0
          %v854 = vadd.f32 0.0, %v853
          %v855 = vpop.f32.mrb[0].mxu0
          %856 = vdwg.mxu0
          %v857 = vpack.c.bf16 %v704, %v699
          %v858 = vpack.c.bf16 %v714, %v709
          %v859 = vpack.c.bf16 %v724, %v719
          %v860 = vpack.c.bf16 %v734, %v729
          %v861 = vpack.c.bf16 %v744, %v739
          %v862 = vpack.c.bf16 %v754, %v749
          %v863 = vpack.c.bf16 %v764, %v759
          %v864 = vpack.c.bf16 %v774, %v769
          %v865 = vpack.c.bf16 %v784, %v779
          %v866 = vpack.c.bf16 %v794, %v789
          %v867 = vpack.c.bf16 %v804, %v799
          %v868 = vpack.c.bf16 %v814, %v809
          %v869 = vpack.c.bf16 %v824, %v819
          %v870 = vpack.c.bf16 %v834, %v829
          %v871 = vpack.c.bf16 %v844, %v839
          %v872 = vpack.c.bf16 %v854, %v849
          %873 = vst [vmem:[#allocation3] sm:$0xff] %v857
          %874 = vst [vmem:[#allocation3 + $0x8] sm:$0xff] %v858
          %875 = vst [vmem:[#allocation3 + $0x10] sm:$0xff] %v859
          %876 = vst [vmem:[#allocation3 + $0x18] sm:$0xff] %v860
          %877 = vst [vmem:[#allocation3 + $0x20] sm:$0xff] %v861
          %878 = vst [vmem:[#allocation3 + $0x28] sm:$0xff] %v862
          %879 = vst [vmem:[#allocation3 + $0x30] sm:$0xff] %v863
          %880 = vst [vmem:[#allocation3 + $0x38] sm:$0xff] %v864
          %881 = vst [vmem:[#allocation3 + $0x40] sm:$0xff] %v865
          %882 = vst [vmem:[#allocation3 + $0x48] sm:$0xff] %v866
          %883 = vst [vmem:[#allocation3 + $0x50] sm:$0xff] %v867
          %884 = vst [vmem:[#allocation3 + $0x58] sm:$0xff] %v868
          %885 = vst [vmem:[#allocation3 + $0x60] sm:$0xff] %v869
          %886 = vst [vmem:[#allocation3 + $0x68] sm:$0xff] %v870
          %887 = vst [vmem:[#allocation3 + $0x70] sm:$0xff] %v871
          %888 = vst [vmem:[#allocation3 + $0x78] sm:$0xff] %v872
          %p889 = scmp.eq.s32.totalorder %s35, 3
          // Predicated region
          $region97: #{tpu_custom_call.1} parent=91 // pred_check
            %p890 = pneg %p889
          $region98: #{tpu_custom_call.1} parent=91 // pred_check_branch
            %892 = sbr.rel (%p890) target = $region100
          $region99: #{tpu_custom_call.1} parent=91 // pred_region
            %893 = vst [vmem:[#allocation5] sm:$0xff] 0.0
          $region100: #{tpu_custom_call.1} parent=91 // pred_fallthru
            _
        $region92: #{tpu_custom_call.1} parent=63 // pred_fallthru
          _
        // Predicated region
        $region101: #{tpu_custom_call.1} parent=63 // pred_check
          %p894 = pneg %p511
        $region102: #{tpu_custom_call.1} parent=63 // pred_check_branch
          %896 = sbr.rel (%p894) target = $region104
        $region103: #{tpu_custom_call.1} parent=63 // pred_region
          %897 = vst [vmem:[#allocation4] sm:$0xff] 0.0
          %898 = vst [vmem:[#allocation4 + $0x8] sm:$0xff] 0.0
          %899 = vst [vmem:[#allocation4 + $0x10] sm:$0xff] 0.0
          %900 = vst [vmem:[#allocation4 + $0x18] sm:$0xff] 0.0
          %901 = vst [vmem:[#allocation4 + $0x20] sm:$0xff] 0.0
          %902 = vst [vmem:[#allocation4 + $0x28] sm:$0xff] 0.0
          %903 = vst [vmem:[#allocation4 + $0x30] sm:$0xff] 0.0
          %904 = vst [vmem:[#allocation4 + $0x38] sm:$0xff] 0.0
          %905 = vst [vmem:[#allocation4 + $0x40] sm:$0xff] 0.0
          %906 = vst [vmem:[#allocation4 + $0x48] sm:$0xff] 0.0
          %907 = vst [vmem:[#allocation4 + $0x50] sm:$0xff] 0.0
          %908 = vst [vmem:[#allocation4 + $0x58] sm:$0xff] 0.0
          %909 = vst [vmem:[#allocation4 + $0x60] sm:$0xff] 0.0
          %910 = vst [vmem:[#allocation4 + $0x68] sm:$0xff] 0.0
          %911 = vst [vmem:[#allocation4 + $0x70] sm:$0xff] 0.0
          %912 = vst [vmem:[#allocation4 + $0x78] sm:$0xff] 0.0
          %913 = vst [vmem:[#allocation4 + $0x80] sm:$0xff] 0.0
          %914 = vst [vmem:[#allocation4 + $0x88] sm:$0xff] 0.0
          %915 = vst [vmem:[#allocation4 + $0x90] sm:$0xff] 0.0
          %916 = vst [vmem:[#allocation4 + $0x98] sm:$0xff] 0.0
          %917 = vst [vmem:[#allocation4 + $0xa0] sm:$0xff] 0.0
          %918 = vst [vmem:[#allocation4 + $0xa8] sm:$0xff] 0.0
          %919 = vst [vmem:[#allocation4 + $0xb0] sm:$0xff] 0.0
          %920 = vst [vmem:[#allocation4 + $0xb8] sm:$0xff] 0.0
          %921 = vst [vmem:[#allocation4 + $0xc0] sm:$0xff] 0.0
          %922 = vst [vmem:[#allocation4 + $0xc8] sm:$0xff] 0.0
          %923 = vst [vmem:[#allocation4 + $0xd0] sm:$0xff] 0.0
          %924 = vst [vmem:[#allocation4 + $0xd8] sm:$0xff] 0.0
          %925 = vst [vmem:[#allocation4 + $0xe0] sm:$0xff] 0.0
          %926 = vst [vmem:[#allocation4 + $0xe8] sm:$0xff] 0.0
          %927 = vst [vmem:[#allocation4 + $0xf0] sm:$0xff] 0.0
          %928 = vst [vmem:[#allocation4 + $0xf8] sm:$0xff] 0.0
        $region104: #{tpu_custom_call.1} parent=63 // pred_fallthru
          _
        %s929 = sshra.s32 %s508, 3
        %s930 = sand.u32 %s508, 7
        %s931 = smul.u32 %s929, 2
        %s932 = smul.u32 %s37, 64
        %s933 = sadd.s32 %s931, %s932
        %s934 = smul.addr %s933, 4
        %s935 = scalar_lea.vmem [#allocation12], %s934
        %v936 = vld [vmem:[%s935] sm:$0xff]
        %v937 = vld [vmem:[%s935 + $0x8] sm:$0xff]
        %v938 = vld [vmem:[%s935 + $0x10] sm:$0xff]
        %v939 = vld [vmem:[%s935 + $0x18] sm:$0xff]
        %v940 = vld [vmem:[%s935 + $0x20] sm:$0xff]
        %v941 = vld [vmem:[%s935 + $0x28] sm:$0xff]
        %v942 = vld [vmem:[%s935 + $0x30] sm:$0xff]
        %v943 = vld [vmem:[%s935 + $0x38] sm:$0xff]
        %v944 = vld [vmem:[%s935 + $0x40] sm:$0xff]
        %v945 = vld [vmem:[%s935 + $0x48] sm:$0xff]
        %v946 = vld [vmem:[%s935 + $0x50] sm:$0xff]
        %v947 = vld [vmem:[%s935 + $0x58] sm:$0xff]
        %v948 = vld [vmem:[%s935 + $0x60] sm:$0xff]
        %v949 = vld [vmem:[%s935 + $0x68] sm:$0xff]
        %v950 = vld [vmem:[%s935 + $0x70] sm:$0xff]
        %v951 = vld [vmem:[%s935 + $0x78] sm:$0xff]
        %v952 = vld [vmem:[%s935 + $0x80] sm:$0xff]
        %v953 = vld [vmem:[%s935 + $0x88] sm:$0xff]
        %v954 = vld [vmem:[%s935 + $0x90] sm:$0xff]
        %v955 = vld [vmem:[%s935 + $0x98] sm:$0xff]
        %v956 = vld [vmem:[%s935 + $0xa0] sm:$0xff]
        %v957 = vld [vmem:[%s935 + $0xa8] sm:$0xff]
        %v958 = vld [vmem:[%s935 + $0xb0] sm:$0xff]
        %v959 = vld [vmem:[%s935 + $0xb8] sm:$0xff]
        %v960 = vld [vmem:[%s935 + $0xc0] sm:$0xff]
        %v961 = vld [vmem:[%s935 + $0xc8] sm:$0xff]
        %v962 = vld [vmem:[%s935 + $0xd0] sm:$0xff]
        %v963 = vld [vmem:[%s935 + $0xd8] sm:$0xff]
        %v964 = vld [vmem:[%s935 + $0xe0] sm:$0xff]
        %v965 = vld [vmem:[%s935 + $0xe8] sm:$0xff]
        %v966 = vld [vmem:[%s935 + $0xf0] sm:$0xff]
        %v967 = vld [vmem:[%s935 + $0xf8] sm:$0xff]
        %v968 = vld [vmem:[#allocation4] sm:$0xff]
        %v969 = vld [vmem:[#allocation4 + $0x8] sm:$0xff]
        %v970 = vld [vmem:[#allocation4 + $0x10] sm:$0xff]
        %v971 = vld [vmem:[#allocation4 + $0x18] sm:$0xff]
        %v972 = vld [vmem:[#allocation4 + $0x20] sm:$0xff]
        %v973 = vld [vmem:[#allocation4 + $0x28] sm:$0xff]
        %v974 = vld [vmem:[#allocation4 + $0x30] sm:$0xff]
        %v975 = vld [vmem:[#allocation4 + $0x38] sm:$0xff]
        %v976 = vld [vmem:[#allocation4 + $0x40] sm:$0xff]
        %v977 = vld [vmem:[#allocation4 + $0x48] sm:$0xff]
        %v978 = vld [vmem:[#allocation4 + $0x50] sm:$0xff]
        %v979 = vld [vmem:[#allocation4 + $0x58] sm:$0xff]
        %v980 = vld [vmem:[#allocation4 + $0x60] sm:$0xff]
        %v981 = vld [vmem:[#allocation4 + $0x68] sm:$0xff]
        %v982 = vld [vmem:[#allocation4 + $0x70] sm:$0xff]
        %v983 = vld [vmem:[#allocation4 + $0x78] sm:$0xff]
        %v984 = vld [vmem:[#allocation4 + $0x80] sm:$0xff]
        %v985 = vld [vmem:[#allocation4 + $0x88] sm:$0xff]
        %v986 = vld [vmem:[#allocation4 + $0x90] sm:$0xff]
        %v987 = vld [vmem:[#allocation4 + $0x98] sm:$0xff]
        %v988 = vld [vmem:[#allocation4 + $0xa0] sm:$0xff]
        %v989 = vld [vmem:[#allocation4 + $0xa8] sm:$0xff]
        %v990 = vld [vmem:[#allocation4 + $0xb0] sm:$0xff]
        %v991 = vld [vmem:[#allocation4 + $0xb8] sm:$0xff]
        %v992 = vld [vmem:[#allocation4 + $0xc0] sm:$0xff]
        %v993 = vld [vmem:[#allocation4 + $0xc8] sm:$0xff]
        %v994 = vld [vmem:[#allocation4 + $0xd0] sm:$0xff]
        %v995 = vld [vmem:[#allocation4 + $0xd8] sm:$0xff]
        %v996 = vld [vmem:[#allocation4 + $0xe0] sm:$0xff]
        %v997 = vld [vmem:[#allocation4 + $0xe8] sm:$0xff]
        %v998 = vld [vmem:[#allocation4 + $0xf0] sm:$0xff]
        %v999 = vld [vmem:[#allocation4 + $0xf8] sm:$0xff]
        %s1000 = sshra.s32 %s509, 4
        %s1001 = sand.u32 %s509, 15
        %s1002 = smul.addr %s1000, 8
        %s1003 = scalar_lea.vmem [#allocation3], %s1002
        %v1004 = vld [vmem:[%s1003] sm:$0xff]
        %v1005 = vld [vmem:[%s1003 + $0x8] sm:$0xff]
        %v1006 = vld [vmem:[%s1003 + $0x10] sm:$0xff]
        %v1007 = vld [vmem:[%s1003 + $0x18] sm:$0xff]
        %v1008 = vld [vmem:[%s1003 + $0x20] sm:$0xff]
        %v1009 = vld [vmem:[%s1003 + $0x28] sm:$0xff]
        %v1010 = vld [vmem:[%s1003 + $0x30] sm:$0xff]
        %v1011 = vld [vmem:[%s1003 + $0x38] sm:$0xff]
        %v1012 = vld [vmem:[%s1003 + $0x40] sm:$0xff]
        %v1013 = vld [vmem:[%s1003 + $0x48] sm:$0xff]
        %v1014 = vld [vmem:[%s1003 + $0x50] sm:$0xff]
        %v1015 = vld [vmem:[%s1003 + $0x58] sm:$0xff]
        %v1016 = vld [vmem:[%s1003 + $0x60] sm:$0xff]
        %v1017 = vld [vmem:[%s1003 + $0x68] sm:$0xff]
        %v1018 = vld [vmem:[%s1003 + $0x70] sm:$0xff]
        %v1019 = vld [vmem:[%s1003 + $0x78] sm:$0xff]
        %v1052 = vunpack.c.l.b16 %v936
        %v1053 = vunpack.c.h.b16 %v936
        %v1054 = vunpack.c.l.b16 %v937
        %v1055 = vunpack.c.h.b16 %v937
        %v1056 = vunpack.c.l.b16 %v938
        %v1057 = vunpack.c.h.b16 %v938
        %v1058 = vunpack.c.l.b16 %v939
        %v1059 = vunpack.c.h.b16 %v939
        %v1060 = vunpack.c.l.b16 %v940
        %v1061 = vunpack.c.h.b16 %v940
        %v1062 = vunpack.c.l.b16 %v941
        %v1063 = vunpack.c.h.b16 %v941
        %v1064 = vunpack.c.l.b16 %v942
        %v1065 = vunpack.c.h.b16 %v942
        %v1066 = vunpack.c.l.b16 %v943
        %v1067 = vunpack.c.h.b16 %v943
        %v1068 = vunpack.c.l.b16 %v944
        %v1069 = vunpack.c.h.b16 %v944
        %v1070 = vunpack.c.l.b16 %v945
        %v1071 = vunpack.c.h.b16 %v945
        %v1072 = vunpack.c.l.b16 %v946
        %v1073 = vunpack.c.h.b16 %v946
        %v1074 = vunpack.c.l.b16 %v947
        %v1075 = vunpack.c.h.b16 %v947
        %v1076 = vunpack.c.l.b16 %v948
        %v1077 = vunpack.c.h.b16 %v948
        %v1078 = vunpack.c.l.b16 %v949
        %v1079 = vunpack.c.h.b16 %v949
        %v1080 = vunpack.c.l.b16 %v950
        %v1081 = vunpack.c.h.b16 %v950
        %v1082 = vunpack.c.l.b16 %v951
        %v1083 = vunpack.c.h.b16 %v951
        %v1084 = vunpack.c.l.b16 %v952
        %v1085 = vunpack.c.h.b16 %v952
        %v1086 = vunpack.c.l.b16 %v953
        %v1087 = vunpack.c.h.b16 %v953
        %v1088 = vunpack.c.l.b16 %v954
        %v1089 = vunpack.c.h.b16 %v954
        %v1090 = vunpack.c.l.b16 %v955
        %v1091 = vunpack.c.h.b16 %v955
        %v1092 = vunpack.c.l.b16 %v956
        %v1093 = vunpack.c.h.b16 %v956
        %v1094 = vunpack.c.l.b16 %v957
        %v1095 = vunpack.c.h.b16 %v957
        %v1096 = vunpack.c.l.b16 %v958
        %v1097 = vunpack.c.h.b16 %v958
        %v1098 = vunpack.c.l.b16 %v959
        %v1099 = vunpack.c.h.b16 %v959
        %v1100 = vunpack.c.l.b16 %v960
        %v1101 = vunpack.c.h.b16 %v960
        %v1102 = vunpack.c.l.b16 %v961
        %v1103 = vunpack.c.h.b16 %v961
        %v1104 = vunpack.c.l.b16 %v962
        %v1105 = vunpack.c.h.b16 %v962
        %v1106 = vunpack.c.l.b16 %v963
        %v1107 = vunpack.c.h.b16 %v963
        %v1108 = vunpack.c.l.b16 %v964
        %v1109 = vunpack.c.h.b16 %v964
        %v1110 = vunpack.c.l.b16 %v965
        %v1111 = vunpack.c.h.b16 %v965
        %v1112 = vunpack.c.l.b16 %v966
        %v1113 = vunpack.c.h.b16 %v966
        %v1114 = vunpack.c.l.b16 %v967
        %v1115 = vunpack.c.h.b16 %v967
        %v1116 = vpack.c.b16 %v1054, %v1052
        %v1117 = vpack.c.b16 %v1055, %v1053
        %v1118 = vpack.c.b16 %v1058, %v1056
        %v1119 = vpack.c.b16 %v1059, %v1057
        %v1120 = vpack.c.b16 %v1062, %v1060
        %v1121 = vpack.c.b16 %v1063, %v1061
        %v1122 = vpack.c.b16 %v1066, %v1064
        %v1123 = vpack.c.b16 %v1067, %v1065
        %v1124 = vpack.c.b16 %v1070, %v1068
        %v1125 = vpack.c.b16 %v1071, %v1069
        %v1126 = vpack.c.b16 %v1074, %v1072
        %v1127 = vpack.c.b16 %v1075, %v1073
        %v1128 = vpack.c.b16 %v1078, %v1076
        %v1129 = vpack.c.b16 %v1079, %v1077
        %v1130 = vpack.c.b16 %v1082, %v1080
        %v1131 = vpack.c.b16 %v1083, %v1081
        %v1132 = vpack.c.b16 %v1086, %v1084
        %v1133 = vpack.c.b16 %v1087, %v1085
        %v1134 = vpack.c.b16 %v1090, %v1088
        %v1135 = vpack.c.b16 %v1091, %v1089
        %v1136 = vpack.c.b16 %v1094, %v1092
        %v1137 = vpack.c.b16 %v1095, %v1093
        %v1138 = vpack.c.b16 %v1098, %v1096
        %v1139 = vpack.c.b16 %v1099, %v1097
        %v1140 = vpack.c.b16 %v1102, %v1100
        %v1141 = vpack.c.b16 %v1103, %v1101
        %v1142 = vpack.c.b16 %v1106, %v1104
        %v1143 = vpack.c.b16 %v1107, %v1105
        %v1144 = vpack.c.b16 %v1110, %v1108
        %v1145 = vpack.c.b16 %v1111, %v1109
        %v1146 = vpack.c.b16 %v1114, %v1112
        %v1147 = vpack.c.b16 %v1115, %v1113
        %1180 = vmatprep.subr.bf16.mxu0 0
        %1181 = vmatpush1.bf16.msra.mxu0 %v1004
        %1182 = vmatprep.subr.bf16.mxu0 0
        %1183 = vmatpush1.bf16.msra.mxu0 %v1005
        %1184 = vmatprep.subr.bf16.mxu0 0
        %1185 = vmatpush1.bf16.msra.mxu0 %v1006
        %1186 = vmatprep.subr.bf16.mxu0 0
        %1187 = vmatpush1.bf16.msra.mxu0 %v1007
        %1188 = vmatprep.subr.bf16.mxu0 0
        %1189 = vmatpush1.bf16.msra.mxu0 %v1008
        %1190 = vmatprep.subr.bf16.mxu0 0
        %1191 = vmatpush1.bf16.msra.mxu0 %v1009
        %1192 = vmatprep.subr.bf16.mxu0 0
        %1193 = vmatpush1.bf16.msra.mxu0 %v1010
        %1194 = vmatprep.subr.bf16.mxu0 0
        %1195 = vmatpush1.bf16.msra.mxu0 %v1011
        %1196 = vmatprep.subr.bf16.mxu0 0
        %1197 = vmatpush1.bf16.msra.mxu0 %v1012
        %1198 = vmatprep.subr.bf16.mxu0 0
        %1199 = vmatpush1.bf16.msra.mxu0 %v1013
        %1200 = vmatprep.subr.bf16.mxu0 0
        %1201 = vmatpush1.bf16.msra.mxu0 %v1014
        %1202 = vmatprep.subr.bf16.mxu0 0
        %1203 = vmatpush1.bf16.msra.mxu0 %v1015
        %1204 = vmatprep.subr.bf16.mxu0 0
        %1205 = vmatpush1.bf16.msra.mxu0 %v1016
        %1206 = vmatprep.subr.bf16.mxu0 0
        %1207 = vmatpush1.bf16.msra.mxu0 %v1017
        %1208 = vmatprep.subr.bf16.mxu0 0
        %1209 = vmatpush1.bf16.msra.mxu0 %v1018
        %1210 = vmatprep.subr.bf16.mxu0 0
        %1211 = vmatpush1.bf16.msra.mxu0 %v1019
        %1212 = vmatprep.mubr.bf16.mxu0 %v1117
        %1213 = vmatmul.mubr.bf16.gmra.mrb[0].mxu0 %v1116
        %v1214 = vpop.f32.mrb[0].mxu0
        %v1215 = vadd.f32 0.0, %v1214
        %v1216 = vpop.f32.mrb[0].mxu0
        %v1217 = vpop.f32.mrb[0].mxu0
        %v1218 = vadd.f32 0.0, %v1217
        %v1219 = vpop.f32.mrb[0].mxu0
        %1220 = vmatprep.mubr.bf16.mxu0 %v1119
        %1221 = vmatmul.mubr.bf16.gmra.mrb[0].mxu0 %v1118
        %v1222 = vpop.f32.mrb[0].mxu0
        %v1223 = vadd.f32 0.0, %v1222
        %v1224 = vpop.f32.mrb[0].mxu0
        %v1225 = vpop.f32.mrb[0].mxu0
        %v1226 = vadd.f32 0.0, %v1225
        %v1227 = vpop.f32.mrb[0].mxu0
        %1228 = vmatprep.mubr.bf16.mxu0 %v1121
        %1229 = vmatmul.mubr.bf16.gmra.mrb[0].mxu0 %v1120
        %v1230 = vpop.f32.mrb[0].mxu0
        %v1231 = vadd.f32 0.0, %v1230
        %v1232 = vpop.f32.mrb[0].mxu0
        %v1233 = vpop.f32.mrb[0].mxu0
        %v1234 = vadd.f32 0.0, %v1233
        %v1235 = vpop.f32.mrb[0].mxu0
        %1236 = vmatprep.mubr.bf16.mxu0 %v1123
        %1237 = vmatmul.mubr.bf16.gmra.mrb[0].mxu0 %v1122
        %v1238 = vpop.f32.mrb[0].mxu0
        %v1239 = vadd.f32 0.0, %v1238
        %v1240 = vpop.f32.mrb[0].mxu0
        %v1241 = vpop.f32.mrb[0].mxu0
        %v1242 = vadd.f32 0.0, %v1241
        %v1243 = vpop.f32.mrb[0].mxu0
        %1244 = vmatprep.mubr.bf16.mxu0 %v1125
        %1245 = vmatmul.mubr.bf16.gmra.mrb[0].mxu0 %v1124
        %v1246 = vpop.f32.mrb[0].mxu0
        %v1247 = vadd.f32 0.0, %v1246
        %v1248 = vpop.f32.mrb[0].mxu0
        %v1249 = vpop.f32.mrb[0].mxu0
        %v1250 = vadd.f32 0.0, %v1249
        %v1251 = vpop.f32.mrb[0].mxu0
        %1252 = vmatprep.mubr.bf16.mxu0 %v1127
        %1253 = vmatmul.mubr.bf16.gmra.mrb[0].mxu0 %v1126
        %v1254 = vpop.f32.mrb[0].mxu0
        %v1255 = vadd.f32 0.0, %v1254
        %v1256 = vpop.f32.mrb[0].mxu0
        %v1257 = vpop.f32.mrb[0].mxu0
        %v1258 = vadd.f32 0.0, %v1257
        %v1259 = vpop.f32.mrb[0].mxu0
        %1260 = vmatprep.mubr.bf16.mxu0 %v1129
        %1261 = vmatmul.mubr.bf16.gmra.mrb[0].mxu0 %v1128
        %v1262 = vpop.f32.mrb[0].mxu0
        %v1263 = vadd.f32 0.0, %v1262
        %v1264 = vpop.f32.mrb[0].mxu0
        %v1265 = vpop.f32.mrb[0].mxu0
        %v1266 = vadd.f32 0.0, %v1265
        %v1267 = vpop.f32.mrb[0].mxu0
        %1268 = vmatprep.mubr.bf16.mxu0 %v1131
        %1269 = vmatmul.mubr.bf16.gmra.mrb[0].mxu0 %v1130
        %v1270 = vpop.f32.mrb[0].mxu0
        %v1271 = vadd.f32 0.0, %v1270
        %v1272 = vpop.f32.mrb[0].mxu0
        %v1273 = vpop.f32.mrb[0].mxu0
        %v1274 = vadd.f32 0.0, %v1273
        %v1275 = vpop.f32.mrb[0].mxu0
        %1276 = vmatprep.mubr.bf16.mxu0 %v1133
        %1277 = vmatmul.mubr.bf16.gmra.mrb[0].mxu0 %v1132
        %v1278 = vpop.f32.mrb[0].mxu0
        %v1279 = vadd.f32 0.0, %v1278
        %v1280 = vpop.f32.mrb[0].mxu0
        %v1281 = vpop.f32.mrb[0].mxu0
        %v1282 = vadd.f32 0.0, %v1281
        %v1283 = vpop.f32.mrb[0].mxu0
        %1284 = vmatprep.mubr.bf16.mxu0 %v1135
        %1285 = vmatmul.mubr.bf16.gmra.mrb[0].mxu0 %v1134
        %v1286 = vpop.f32.mrb[0].mxu0
        %v1287 = vadd.f32 0.0, %v1286
        %v1288 = vpop.f32.mrb[0].mxu0
        %v1289 = vpop.f32.mrb[0].mxu0
        %v1290 = vadd.f32 0.0, %v1289
        %v1291 = vpop.f32.mrb[0].mxu0
        %1292 = vmatprep.mubr.bf16.mxu0 %v1137
        %1293 = vmatmul.mubr.bf16.gmra.mrb[0].mxu0 %v1136
        %v1294 = vpop.f32.mrb[0].mxu0
        %v1295 = vadd.f32 0.0, %v1294
        %v1296 = vpop.f32.mrb[0].mxu0
        %v1297 = vpop.f32.mrb[0].mxu0
        %v1298 = vadd.f32 0.0, %v1297
        %v1299 = vpop.f32.mrb[0].mxu0
        %1300 = vmatprep.mubr.bf16.mxu0 %v1139
        %1301 = vmatmul.mubr.bf16.gmra.mrb[0].mxu0 %v1138
        %v1302 = vpop.f32.mrb[0].mxu0
        %v1303 = vadd.f32 0.0, %v1302
        %v1304 = vpop.f32.mrb[0].mxu0
        %v1305 = vpop.f32.mrb[0].mxu0
        %v1306 = vadd.f32 0.0, %v1305
        %v1307 = vpop.f32.mrb[0].mxu0
        %1308 = vmatprep.mubr.bf16.mxu0 %v1141
        %1309 = vmatmul.mubr.bf16.gmra.mrb[0].mxu0 %v1140
        %v1310 = vpop.f32.mrb[0].mxu0
        %v1311 = vadd.f32 0.0, %v1310
        %v1312 = vpop.f32.mrb[0].mxu0
        %v1313 = vpop.f32.mrb[0].mxu0
        %v1314 = vadd.f32 0.0, %v1313
        %v1315 = vpop.f32.mrb[0].mxu0
        %1316 = vmatprep.mubr.bf16.mxu0 %v1143
        %1317 = vmatmul.mubr.bf16.gmra.mrb[0].mxu0 %v1142
        %v1318 = vpop.f32.mrb[0].mxu0
        %v1319 = vadd.f32 0.0, %v1318
        %v1320 = vpop.f32.mrb[0].mxu0
        %v1321 = vpop.f32.mrb[0].mxu0
        %v1322 = vadd.f32 0.0, %v1321
        %v1323 = vpop.f32.mrb[0].mxu0
        %1324 = vmatprep.mubr.bf16.mxu0 %v1145
        %1325 = vmatmul.mubr.bf16.gmra.mrb[0].mxu0 %v1144
        %v1326 = vpop.f32.mrb[0].mxu0
        %v1327 = vadd.f32 0.0, %v1326
        %v1328 = vpop.f32.mrb[0].mxu0
        %v1329 = vpop.f32.mrb[0].mxu0
        %v1330 = vadd.f32 0.0, %v1329
        %v1331 = vpop.f32.mrb[0].mxu0
        %1332 = vmatprep.mubr.bf16.mxu0 %v1147
        %1333 = vmatmul.mubr.bf16.gmra.mrb[0].mxu0 %v1146
        %v1334 = vpop.f32.mrb[0].mxu0
        %v1335 = vadd.f32 0.0, %v1334
        %v1336 = vpop.f32.mrb[0].mxu0
        %v1337 = vpop.f32.mrb[0].mxu0
        %v1338 = vadd.f32 0.0, %v1337
        %v1339 = vpop.f32.mrb[0].mxu0
        %1340 = vdwg.mxu0
        %v1341 = vadd.f32 %v968, %v1215
        %v1342 = vadd.f32 %v969, %v1218
        %v1343 = vadd.f32 %v970, %v1223
        %v1344 = vadd.f32 %v971, %v1226
        %v1345 = vadd.f32 %v972, %v1231
        %v1346 = vadd.f32 %v973, %v1234
        %v1347 = vadd.f32 %v974, %v1239
        %v1348 = vadd.f32 %v975, %v1242
        %v1349 = vadd.f32 %v976, %v1247
        %v1350 = vadd.f32 %v977, %v1250
        %v1351 = vadd.f32 %v978, %v1255
        %v1352 = vadd.f32 %v979, %v1258
        %v1353 = vadd.f32 %v980, %v1263
        %v1354 = vadd.f32 %v981, %v1266
        %v1355 = vadd.f32 %v982, %v1271
        %v1356 = vadd.f32 %v983, %v1274
        %v1357 = vadd.f32 %v984, %v1279
        %v1358 = vadd.f32 %v985, %v1282
        %v1359 = vadd.f32 %v986, %v1287
        %v1360 = vadd.f32 %v987, %v1290
        %v1361 = vadd.f32 %v988, %v1295
        %v1362 = vadd.f32 %v989, %v1298
        %v1363 = vadd.f32 %v990, %v1303
        %v1364 = vadd.f32 %v991, %v1306
        %v1365 = vadd.f32 %v992, %v1311
        %v1366 = vadd.f32 %v993, %v1314
        %v1367 = vadd.f32 %v994, %v1319
        %v1368 = vadd.f32 %v995, %v1322
        %v1369 = vadd.f32 %v996, %v1327
        %v1370 = vadd.f32 %v997, %v1330
        %v1371 = vadd.f32 %v998, %v1335
        %v1372 = vadd.f32 %v999, %v1338
        %1373 = vst [vmem:[#allocation4] sm:$0xff] %v1341
        %1374 = vst [vmem:[#allocation4 + $0x8] sm:$0xff] %v1342
        %1375 = vst [vmem:[#allocation4 + $0x10] sm:$0xff] %v1343
        %1376 = vst [vmem:[#allocation4 + $0x18] sm:$0xff] %v1344
        %1377 = vst [vmem:[#allocation4 + $0x20] sm:$0xff] %v1345
        %1378 = vst [vmem:[#allocation4 + $0x28] sm:$0xff] %v1346
        %1379 = vst [vmem:[#allocation4 + $0x30] sm:$0xff] %v1347
        %1380 = vst [vmem:[#allocation4 + $0x38] sm:$0xff] %v1348
        %1381 = vst [vmem:[#allocation4 + $0x40] sm:$0xff] %v1349
        %1382 = vst [vmem:[#allocation4 + $0x48] sm:$0xff] %v1350
        %1383 = vst [vmem:[#allocation4 + $0x50] sm:$0xff] %v1351
        %1384 = vst [vmem:[#allocation4 + $0x58] sm:$0xff] %v1352
        %1385 = vst [vmem:[#allocation4 + $0x60] sm:$0xff] %v1353
        %1386 = vst [vmem:[#allocation4 + $0x68] sm:$0xff] %v1354
        %1387 = vst [vmem:[#allocation4 + $0x70] sm:$0xff] %v1355
        %1388 = vst [vmem:[#allocation4 + $0x78] sm:$0xff] %v1356
        %1389 = vst [vmem:[#allocation4 + $0x80] sm:$0xff] %v1357
        %1390 = vst [vmem:[#allocation4 + $0x88] sm:$0xff] %v1358
        %1391 = vst [vmem:[#allocation4 + $0x90] sm:$0xff] %v1359
        %1392 = vst [vmem:[#allocation4 + $0x98] sm:$0xff] %v1360
        %1393 = vst [vmem:[#allocation4 + $0xa0] sm:$0xff] %v1361
        %1394 = vst [vmem:[#allocation4 + $0xa8] sm:$0xff] %v1362
        %1395 = vst [vmem:[#allocation4 + $0xb0] sm:$0xff] %v1363
        %1396 = vst [vmem:[#allocation4 + $0xb8] sm:$0xff] %v1364
        %1397 = vst [vmem:[#allocation4 + $0xc0] sm:$0xff] %v1365
        %1398 = vst [vmem:[#allocation4 + $0xc8] sm:$0xff] %v1366
        %1399 = vst [vmem:[#allocation4 + $0xd0] sm:$0xff] %v1367
        %1400 = vst [vmem:[#allocation4 + $0xd8] sm:$0xff] %v1368
        %1401 = vst [vmem:[#allocation4 + $0xe0] sm:$0xff] %v1369
        %1402 = vst [vmem:[#allocation4 + $0xe8] sm:$0xff] %v1370
        %1403 = vst [vmem:[#allocation4 + $0xf0] sm:$0xff] %v1371
        %1404 = vst [vmem:[#allocation4 + $0xf8] sm:$0xff] %v1372
        // Predicated region
        $region105: #{tpu_custom_call.1} parent=63 // pred_check
          %p1405 = pneg %p511
        $region106: #{tpu_custom_call.1} parent=63 // pred_check_branch
          %1407 = sbr.rel (%p1405) target = $region108
        $region107: #{tpu_custom_call.1} parent=63 // pred_region
          %v1408 = vld [vmem:[#allocation4] sm:$0xff]
          %v1409 = vld [vmem:[#allocation4 + $0x8] sm:$0xff]
          %v1410 = vld [vmem:[#allocation4 + $0x10] sm:$0xff]
          %v1411 = vld [vmem:[#allocation4 + $0x18] sm:$0xff]
          %v1412 = vld [vmem:[#allocation4 + $0x20] sm:$0xff]
          %v1413 = vld [vmem:[#allocation4 + $0x28] sm:$0xff]
          %v1414 = vld [vmem:[#allocation4 + $0x30] sm:$0xff]
          %v1415 = vld [vmem:[#allocation4 + $0x38] sm:$0xff]
          %v1416 = vld [vmem:[#allocation4 + $0x40] sm:$0xff]
          %v1417 = vld [vmem:[#allocation4 + $0x48] sm:$0xff]
          %v1418 = vld [vmem:[#allocation4 + $0x50] sm:$0xff]
          %v1419 = vld [vmem:[#allocation4 + $0x58] sm:$0xff]
          %v1420 = vld [vmem:[#allocation4 + $0x60] sm:$0xff]
          %v1421 = vld [vmem:[#allocation4 + $0x68] sm:$0xff]
          %v1422 = vld [vmem:[#allocation4 + $0x70] sm:$0xff]
          %v1423 = vld [vmem:[#allocation4 + $0x78] sm:$0xff]
          %v1424 = vld [vmem:[#allocation4 + $0x80] sm:$0xff]
          %v1425 = vld [vmem:[#allocation4 + $0x88] sm:$0xff]
          %v1426 = vld [vmem:[#allocation4 + $0x90] sm:$0xff]
          %v1427 = vld [vmem:[#allocation4 + $0x98] sm:$0xff]
          %v1428 = vld [vmem:[#allocation4 + $0xa0] sm:$0xff]
          %v1429 = vld [vmem:[#allocation4 + $0xa8] sm:$0xff]
          %v1430 = vld [vmem:[#allocation4 + $0xb0] sm:$0xff]
          %v1431 = vld [vmem:[#allocation4 + $0xb8] sm:$0xff]
          %v1432 = vld [vmem:[#allocation4 + $0xc0] sm:$0xff]
          %v1433 = vld [vmem:[#allocation4 + $0xc8] sm:$0xff]
          %v1434 = vld [vmem:[#allocation4 + $0xd0] sm:$0xff]
          %v1435 = vld [vmem:[#allocation4 + $0xd8] sm:$0xff]
          %v1436 = vld [vmem:[#allocation4 + $0xe0] sm:$0xff]
          %v1437 = vld [vmem:[#allocation4 + $0xe8] sm:$0xff]
          %v1438 = vld [vmem:[#allocation4 + $0xf0] sm:$0xff]
          %v1439 = vld [vmem:[#allocation4 + $0xf8] sm:$0xff]
          %v1440 = vld [vmem:[%s506] sm:$0x1]
          %v1442 = vlaneseq
          %v1443 = vshrl.u32 %v1442, 7
          %v1444 = vsub.s32 0, %v1443
          %v1445 = vrot.slane %v1440, %v1444
          %v1447 = vadd.f32 %v1408, %v1445
          %v1448 = vadd.f32 %v1409, %v1445
          %v1449 = vadd.f32 %v1410, %v1445
          %v1450 = vadd.f32 %v1411, %v1445
          %v1451 = vadd.f32 %v1412, %v1445
          %v1452 = vadd.f32 %v1413, %v1445
          %v1453 = vadd.f32 %v1414, %v1445
          %v1454 = vadd.f32 %v1415, %v1445
          %v1455 = vadd.f32 %v1416, %v1445
          %v1456 = vadd.f32 %v1417, %v1445
          %v1457 = vadd.f32 %v1418, %v1445
          %v1458 = vadd.f32 %v1419, %v1445
          %v1459 = vadd.f32 %v1420, %v1445
          %v1460 = vadd.f32 %v1421, %v1445
          %v1461 = vadd.f32 %v1422, %v1445
          %v1462 = vadd.f32 %v1423, %v1445
          %v1463 = vadd.f32 %v1424, %v1445
          %v1464 = vadd.f32 %v1425, %v1445
          %v1465 = vadd.f32 %v1426, %v1445
          %v1466 = vadd.f32 %v1427, %v1445
          %v1467 = vadd.f32 %v1428, %v1445
          %v1468 = vadd.f32 %v1429, %v1445
          %v1469 = vadd.f32 %v1430, %v1445
          %v1470 = vadd.f32 %v1431, %v1445
          %v1471 = vadd.f32 %v1432, %v1445
          %v1472 = vadd.f32 %v1433, %v1445
          %v1473 = vadd.f32 %v1434, %v1445
          %v1474 = vadd.f32 %v1435, %v1445
          %v1475 = vadd.f32 %v1436, %v1445
          %v1476 = vadd.f32 %v1437, %v1445
          %v1477 = vadd.f32 %v1438, %v1445
          %v1478 = vadd.f32 %v1439, %v1445
          %s1479 = scalar_lea.vmem [#allocation2], %s508
          %1480 = vst [vmem:[%s1479] sm:$0xff] %v1447
          %1481 = vst [vmem:[%s1479 + $0x8] sm:$0xff] %v1448
          %1482 = vst [vmem:[%s1479 + $0x10] sm:$0xff] %v1449
          %1483 = vst [vmem:[%s1479 + $0x18] sm:$0xff] %v1450
          %1484 = vst [vmem:[%s1479 + $0x20] sm:$0xff] %v1451
          %1485 = vst [vmem:[%s1479 + $0x28] sm:$0xff] %v1452
          %1486 = vst [vmem:[%s1479 + $0x30] sm:$0xff] %v1453
          %1487 = vst [vmem:[%s1479 + $0x38] sm:$0xff] %v1454
          %1488 = vst [vmem:[%s1479 + $0x40] sm:$0xff] %v1455
          %1489 = vst [vmem:[%s1479 + $0x48] sm:$0xff] %v1456
          %1490 = vst [vmem:[%s1479 + $0x50] sm:$0xff] %v1457
          %1491 = vst [vmem:[%s1479 + $0x58] sm:$0xff] %v1458
          %1492 = vst [vmem:[%s1479 + $0x60] sm:$0xff] %v1459
          %1493 = vst [vmem:[%s1479 + $0x68] sm:$0xff] %v1460
          %1494 = vst [vmem:[%s1479 + $0x70] sm:$0xff] %v1461
          %1495 = vst [vmem:[%s1479 + $0x78] sm:$0xff] %v1462
          %1496 = vst [vmem:[%s1479 + $0x80] sm:$0xff] %v1463
          %1497 = vst [vmem:[%s1479 + $0x88] sm:$0xff] %v1464
          %1498 = vst [vmem:[%s1479 + $0x90] sm:$0xff] %v1465
          %1499 = vst [vmem:[%s1479 + $0x98] sm:$0xff] %v1466
          %1500 = vst [vmem:[%s1479 + $0xa0] sm:$0xff] %v1467
          %1501 = vst [vmem:[%s1479 + $0xa8] sm:$0xff] %v1468
          %1502 = vst [vmem:[%s1479 + $0xb0] sm:$0xff] %v1469
          %1503 = vst [vmem:[%s1479 + $0xb8] sm:$0xff] %v1470
          %1504 = vst [vmem:[%s1479 + $0xc0] sm:$0xff] %v1471
          %1505 = vst [vmem:[%s1479 + $0xc8] sm:$0xff] %v1472
          %1506 = vst [vmem:[%s1479 + $0xd0] sm:$0xff] %v1473
          %1507 = vst [vmem:[%s1479 + $0xd8] sm:$0xff] %v1474
          %1508 = vst [vmem:[%s1479 + $0xe0] sm:$0xff] %v1475
          %1509 = vst [vmem:[%s1479 + $0xe8] sm:$0xff] %v1476
          %1510 = vst [vmem:[%s1479 + $0xf0] sm:$0xff] %v1477
          %1511 = vst [vmem:[%s1479 + $0xf8] sm:$0xff] %v1478
          %p1512 = scmp.eq.s32.totalorder %s35, 3
          // Predicated region
          $region109: #{tpu_custom_call.1} parent=107 // pred_check
            %p1513 = pneg %p1512
          $region110: #{tpu_custom_call.1} parent=107 // pred_check_branch
            %1515 = sbr.rel (%p1513) target = $region112
          $region111: #{tpu_custom_call.1} parent=107 // pred_region
            %v1516 = vld [vmem:[#allocation5] sm:$0xff]
            %v1517 = vld [vmem:[#allocation10] sm:$0xff]
            %v1518 = vld [vmem:[#allocation10 + $0x8] sm:$0xff]
            %1519 = vmatprep.subr.mxu0 0.0
            %1520 = vmatpush1.msra.mxu0 %v1447
            %1521 = vmatprep.subr.mxu0 0.0
            %1522 = vmatpush1.msra.mxu0 %v1448
            %1523 = vmatprep.subr.mxu0 0.0
            %1524 = vmatpush1.msra.mxu0 %v1449
            %1525 = vmatprep.subr.mxu0 0.0
            %1526 = vmatpush1.msra.mxu0 %v1450
            %1527 = vmatprep.subr.mxu0 0.0
            %1528 = vmatpush1.msra.mxu0 %v1451
            %1529 = vmatprep.subr.mxu0 0.0
            %1530 = vmatpush1.msra.mxu0 %v1452
            %1531 = vmatprep.subr.mxu0 0.0
            %1532 = vmatpush1.msra.mxu0 %v1453
            %1533 = vmatprep.subr.mxu0 0.0
            %1534 = vmatpush1.msra.mxu0 %v1454
            %1535 = vmatprep.subr.mxu0 0.0
            %1536 = vmatpush1.msra.mxu0 %v1455
            %1537 = vmatprep.subr.mxu0 0.0
            %1538 = vmatpush1.msra.mxu0 %v1456
            %1539 = vmatprep.subr.mxu0 0.0
            %1540 = vmatpush1.msra.mxu0 %v1457
            %1541 = vmatprep.subr.mxu0 0.0
            %1542 = vmatpush1.msra.mxu0 %v1458
            %1543 = vmatprep.subr.mxu0 0.0
            %1544 = vmatpush1.msra.mxu0 %v1459
            %1545 = vmatprep.subr.mxu0 0.0
            %1546 = vmatpush1.msra.mxu0 %v1460
            %1547 = vmatprep.subr.mxu0 0.0
            %1548 = vmatpush1.msra.mxu0 %v1461
            %1549 = vmatprep.subr.mxu0 0.0
            %1550 = vmatpush1.msra.mxu0 %v1462
            %1551 = vmatprep.subr.mxu0 0.0
            %1552 = vmatpush1.msra.mxu0 %v1463
            %1553 = vmatprep.subr.mxu0 0.0
            %1554 = vmatpush1.msra.mxu0 %v1464
            %1555 = vmatprep.subr.mxu0 0.0
            %1556 = vmatpush1.msra.mxu0 %v1465
            %1557 = vmatprep.subr.mxu0 0.0
            %1558 = vmatpush1.msra.mxu0 %v1466
            %1559 = vmatprep.subr.mxu0 0.0
            %1560 = vmatpush1.msra.mxu0 %v1467
            %1561 = vmatprep.subr.mxu0 0.0
            %1562 = vmatpush1.msra.mxu0 %v1468
            %1563 = vmatprep.subr.mxu0 0.0
            %1564 = vmatpush1.msra.mxu0 %v1469
            %1565 = vmatprep.subr.mxu0 0.0
            %1566 = vmatpush1.msra.mxu0 %v1470
            %1567 = vmatprep.subr.mxu0 0.0
            %1568 = vmatpush1.msra.mxu0 %v1471
            %1569 = vmatprep.subr.mxu0 0.0
            %1570 = vmatpush1.msra.mxu0 %v1472
            %1571 = vmatprep.subr.mxu0 0.0
            %1572 = vmatpush1.msra.mxu0 %v1473
            %1573 = vmatprep.subr.mxu0 0.0
            %1574 = vmatpush1.msra.mxu0 %v1474
            %1575 = vmatprep.subr.mxu0 0.0
            %1576 = vmatpush1.msra.mxu0 %v1475
            %1577 = vmatprep.subr.mxu0 0.0
            %1578 = vmatpush1.msra.mxu0 %v1476
            %1579 = vmatprep.subr.mxu0 0.0
            %1580 = vmatpush1.msra.mxu0 %v1477
            %1581 = vmatprep.subr.mxu0 0.0
            %1582 = vmatpush1.msra.mxu0 %v1478
            %1583 = vmatprep.mubr.f32.mxu0 %v1518
            %1584 = vmatmul.mubr.f32.gmra.mrb[0].mxu0 %v1517
            %v1585 = vpop.f32.mrb[0].mxu0
            %v1586 = vadd.f32 0.0, %v1585
            %v1587 = vpop.f32.mrb[0].mxu0
            %1588 = vdwg.mxu0
            %v1589 = vadd.f32 %v1516, %v1586
            %1590 = vst [vmem:[#allocation5] sm:$0xff] %v1589
          $region112: #{tpu_custom_call.1} parent=107 // pred_fallthru
            _
        $region108: #{tpu_custom_call.1} parent=63 // pred_fallthru
          _
        %p1591 = scmp.eq.s32.totalorder %s35, 3
        %p1592 = pnand %p1591, %p510
        %p1593 = pneg %p1592
        %p1594 = pnand %p1593, %p511
        %p1595 = pneg %p1594
        // Predicated region
        $region113: #{tpu_custom_call.1} parent=63 // pred_check
          _
        $region114: #{tpu_custom_call.1} parent=63 // pred_check_branch
          %1597 = sbr.rel (%p1594) target = $region116
        $region115: #{tpu_custom_call.1} parent=63 // pred_region
          %v1598 = vld [vmem:[#allocation5] sm:$0xff]
          %v1599 = vld [vmem:[#allocation15] sm:$0xff]
          %v1600 = vld [vmem:[#allocation15 + $0x8] sm:$0xff]
          %v1601 = vld [vmem:[#allocation15 + $0x10] sm:$0xff]
          %v1602 = vld [vmem:[#allocation15 + $0x18] sm:$0xff]
          %v1603 = vld [vmem:[#allocation15 + $0x20] sm:$0xff]
          %v1604 = vld [vmem:[#allocation15 + $0x28] sm:$0xff]
          %v1605 = vld [vmem:[#allocation15 + $0x30] sm:$0xff]
          %v1606 = vld [vmem:[#allocation15 + $0x38] sm:$0xff]
          %v1607 = vld [vmem:[#allocation15 + $0x40] sm:$0xff]
          %v1608 = vld [vmem:[#allocation15 + $0x48] sm:$0xff]
          %v1609 = vld [vmem:[#allocation15 + $0x50] sm:$0xff]
          %v1610 = vld [vmem:[#allocation15 + $0x58] sm:$0xff]
          %v1611 = vld [vmem:[#allocation15 + $0x60] sm:$0xff]
          %v1612 = vld [vmem:[#allocation15 + $0x68] sm:$0xff]
          %v1613 = vld [vmem:[#allocation15 + $0x70] sm:$0xff]
          %v1614 = vld [vmem:[#allocation15 + $0x78] sm:$0xff]
          %v1615 = vld [vmem:[%s6] sm:$0x1]
          %v1617 = vlaneseq
          %v1618 = vshrl.u32 %v1617, 7
          %v1619 = vsub.s32 0, %v1618
          %v1620 = vrot.slane %v1615, %v1619
          %1622 = vmatprep.subr.mxu0 0.0
          %1623 = vmatpush1.msra.mxu0 %v1599
          %1624 = vmatprep.subr.mxu0 0.0
          %1625 = vmatpush1.msra.mxu0 %v1600
          %1626 = vmatprep.subr.mxu0 0.0
          %1627 = vmatpush1.msra.mxu0 %v1601
          %1628 = vmatprep.subr.mxu0 0.0
          %1629 = vmatpush1.msra.mxu0 %v1602
          %1630 = vmatprep.subr.mxu0 0.0
          %1631 = vmatpush1.msra.mxu0 %v1603
          %1632 = vmatprep.subr.mxu0 0.0
          %1633 = vmatpush1.msra.mxu0 %v1604
          %1634 = vmatprep.subr.mxu0 0.0
          %1635 = vmatpush1.msra.mxu0 %v1605
          %1636 = vmatprep.subr.mxu0 0.0
          %1637 = vmatpush1.msra.mxu0 %v1606
          %1638 = vmatprep.subr.mxu0 0.0
          %1639 = vmatpush1.msra.mxu0 %v1607
          %1640 = vmatprep.subr.mxu0 0.0
          %1641 = vmatpush1.msra.mxu0 %v1608
          %1642 = vmatprep.subr.mxu0 0.0
          %1643 = vmatpush1.msra.mxu0 %v1609
          %1644 = vmatprep.subr.mxu0 0.0
          %1645 = vmatpush1.msra.mxu0 %v1610
          %1646 = vmatprep.subr.mxu0 0.0
          %1647 = vmatpush1.msra.mxu0 %v1611
          %1648 = vmatprep.subr.mxu0 0.0
          %1649 = vmatpush1.msra.mxu0 %v1612
          %1650 = vmatprep.subr.mxu0 0.0
          %1651 = vmatpush1.msra.mxu0 %v1613
          %1652 = vmatprep.subr.mxu0 0.0
          %1653 = vmatpush1.msra.mxu0 %v1614
          %1654 = vmatprep.subr.mxu0 0.0
          %1655 = vmatpush1.msra.mxu0 0.0
          %1656 = vmatprep.subr.mxu0 0.0
          %1657 = vmatpush1.msra.mxu0 0.0
          %1658 = vmatprep.subr.mxu0 0.0
          %1659 = vmatpush1.msra.mxu0 0.0
          %1660 = vmatprep.subr.mxu0 0.0
          %1661 = vmatpush1.msra.mxu0 0.0
          %1662 = vmatprep.subr.mxu0 0.0
          %1663 = vmatpush1.msra.mxu0 0.0
          %1664 = vmatprep.subr.mxu0 0.0
          %1665 = vmatpush1.msra.mxu0 0.0
          %1666 = vmatprep.subr.mxu0 0.0
          %1667 = vmatpush1.msra.mxu0 0.0
          %1668 = vmatprep.subr.mxu0 0.0
          %1669 = vmatpush1.msra.mxu0 0.0
          %1670 = vmatprep.subr.mxu0 0.0
          %1671 = vmatpush1.msra.mxu0 0.0
          %1672 = vmatprep.subr.mxu0 0.0
          %1673 = vmatpush1.msra.mxu0 0.0
          %1674 = vmatprep.subr.mxu0 0.0
          %1675 = vmatpush1.msra.mxu0 0.0
          %1676 = vmatprep.subr.mxu0 0.0
          %1677 = vmatpush1.msra.mxu0 0.0
          %1678 = vmatprep.subr.mxu0 0.0
          %1679 = vmatpush1.msra.mxu0 0.0
          %1680 = vmatprep.subr.mxu0 0.0
          %1681 = vmatpush1.msra.mxu0 0.0
          %1682 = vmatprep.subr.mxu0 0.0
          %1683 = vmatpush1.msra.mxu0 0.0
          %1684 = vmatprep.subr.mxu0 0.0
          %1685 = vmatpush1.msra.mxu0 0.0
          %1686 = vmatprep.mubr.f32.mxu0 0.0
          %1687 = vmatmul.mubr.f32.gmra.mrb[0].mxu0 %v1598
          %v1688 = vpop.f32.mrb[0].mxu0
          %v1689 = vadd.f32 %v1620, %v1688
          %v1690 = vpop.f32.mrb[0].mxu0
          %1691 = vdwg.mxu0
          %v1692 = vld [vmem:[#allocation16] sm:$0xff]
          %v1693 = vld [vmem:[#allocation16 + $0x8] sm:$0xff]
          %v1694 = vld [vmem:[#allocation16 + $0x10] sm:$0xff]
          %v1695 = vld [vmem:[#allocation16 + $0x18] sm:$0xff]
          %v1696 = vld [vmem:[#allocation16 + $0x20] sm:$0xff]
          %v1697 = vld [vmem:[#allocation16 + $0x28] sm:$0xff]
          %v1698 = vld [vmem:[#allocation16 + $0x30] sm:$0xff]
          %v1699 = vld [vmem:[#allocation16 + $0x38] sm:$0xff]
          %v1700 = vld [vmem:[#allocation16 + $0x40] sm:$0xff]
          %v1701 = vld [vmem:[#allocation16 + $0x48] sm:$0xff]
          %v1702 = vld [vmem:[#allocation16 + $0x50] sm:$0xff]
          %v1703 = vld [vmem:[#allocation16 + $0x58] sm:$0xff]
          %v1704 = vld [vmem:[#allocation16 + $0x60] sm:$0xff]
          %v1705 = vld [vmem:[#allocation16 + $0x68] sm:$0xff]
          %v1706 = vld [vmem:[#allocation16 + $0x70] sm:$0xff]
          %v1707 = vld [vmem:[#allocation16 + $0x78] sm:$0xff]
          %v1708 = vld [vmem:[%s8] sm:$0x1]
          %v1710 = vlaneseq
          %v1711 = vshrl.u32 %v1710, 7
          %v1712 = vsub.s32 0, %v1711
          %v1713 = vrot.slane %v1708, %v1712
          %1715 = vmatprep.subr.mxu0 0.0
          %1716 = vmatpush1.msra.mxu0 %v1692
          %1717 = vmatprep.subr.mxu0 0.0
          %1718 = vmatpush1.msra.mxu0 %v1693
          %1719 = vmatprep.subr.mxu0 0.0
          %1720 = vmatpush1.msra.mxu0 %v1694
          %1721 = vmatprep.subr.mxu0 0.0
          %1722 = vmatpush1.msra.mxu0 %v1695
          %1723 = vmatprep.subr.mxu0 0.0
          %1724 = vmatpush1.msra.mxu0 %v1696
          %1725 = vmatprep.subr.mxu0 0.0
          %1726 = vmatpush1.msra.mxu0 %v1697
          %1727 = vmatprep.subr.mxu0 0.0
          %1728 = vmatpush1.msra.mxu0 %v1698
          %1729 = vmatprep.subr.mxu0 0.0
          %1730 = vmatpush1.msra.mxu0 %v1699
          %1731 = vmatprep.subr.mxu0 0.0
          %1732 = vmatpush1.msra.mxu0 %v1700
          %1733 = vmatprep.subr.mxu0 0.0
          %1734 = vmatpush1.msra.mxu0 %v1701
          %1735 = vmatprep.subr.mxu0 0.0
          %1736 = vmatpush1.msra.mxu0 %v1702
          %1737 = vmatprep.subr.mxu0 0.0
          %1738 = vmatpush1.msra.mxu0 %v1703
          %1739 = vmatprep.subr.mxu0 0.0
          %1740 = vmatpush1.msra.mxu0 %v1704
          %1741 = vmatprep.subr.mxu0 0.0
          %1742 = vmatpush1.msra.mxu0 %v1705
          %1743 = vmatprep.subr.mxu0 0.0
          %1744 = vmatpush1.msra.mxu0 %v1706
          %1745 = vmatprep.subr.mxu0 0.0
          %1746 = vmatpush1.msra.mxu0 %v1707
          %1747 = vmatprep.subr.mxu0 0.0
          %1748 = vmatpush1.msra.mxu0 0.0
          %1749 = vmatprep.subr.mxu0 0.0
          %1750 = vmatpush1.msra.mxu0 0.0
          %1751 = vmatprep.subr.mxu0 0.0
          %1752 = vmatpush1.msra.mxu0 0.0
          %1753 = vmatprep.subr.mxu0 0.0
          %1754 = vmatpush1.msra.mxu0 0.0
          %1755 = vmatprep.subr.mxu0 0.0
          %1756 = vmatpush1.msra.mxu0 0.0
          %1757 = vmatprep.subr.mxu0 0.0
          %1758 = vmatpush1.msra.mxu0 0.0
          %1759 = vmatprep.subr.mxu0 0.0
          %1760 = vmatpush1.msra.mxu0 0.0
          %1761 = vmatprep.subr.mxu0 0.0
          %1762 = vmatpush1.msra.mxu0 0.0
          %1763 = vmatprep.subr.mxu0 0.0
          %1764 = vmatpush1.msra.mxu0 0.0
          %1765 = vmatprep.subr.mxu0 0.0
          %1766 = vmatpush1.msra.mxu0 0.0
          %1767 = vmatprep.subr.mxu0 0.0
          %1768 = vmatpush1.msra.mxu0 0.0
          %1769 = vmatprep.subr.mxu0 0.0
          %1770 = vmatpush1.msra.mxu0 0.0
          %1771 = vmatprep.subr.mxu0 0.0
          %1772 = vmatpush1.msra.mxu0 0.0
          %1773 = vmatprep.subr.mxu0 0.0
          %1774 = vmatpush1.msra.mxu0 0.0
          %1775 = vmatprep.subr.mxu0 0.0
          %1776 = vmatpush1.msra.mxu0 0.0
          %1777 = vmatprep.subr.mxu0 0.0
          %1778 = vmatpush1.msra.mxu0 0.0
          %1779 = vmatprep.mubr.f32.mxu0 0.0
          %1780 = vmatmul.mubr.f32.gmra.mrb[0].mxu0 %v1689
          %v1781 = vpop.f32.mrb[0].mxu0
          %v1782 = vadd.f32 %v1713, %v1781
          %v1783 = vpop.f32.mrb[0].mxu0
          %1784 = vdwg.mxu0
          %v1785 = vmax.f32 %v1782, 0.0
          %v1786 = vld [vmem:[%s9] sm:$0x1]
          %v1788 = vlaneseq
          %v1789 = vshrl.u32 %v1788, 7
          %v1790 = vsub.s32 0, %v1789
          %v1791 = vrot.slane %v1786, %v1790
          %v1793 = vmul.f32 %v1785, %v1791
          %1794 = vadd.xlane.f32.xlu0 %v1793
          %v1795 = vpop.xlane.xlu0 %1794
          %s1796 = sld [smem:[#allocation6]]
          %v1797 = vstv %s1796
          %v1798 = vadd.f32 %v1795, %v1797
          %v1799 = vlaneseq
          %v1800 = vand.u32 %v1799, 127
          %vm1801 = vcmp.eq.s32.totalorder %v1800, 64
          %v1802 = vsel %vm1801, %v1798, %v1689
          %1803 = vst [vmem:[#allocation18] sm:$0xff] %v1802
        $region116: #{tpu_custom_call.1} parent=63 // pred_fallthru
          _
        // Predicated region
        $region117: #{tpu_custom_call.1} parent=63 // pred_check
          %p1804 = pneg %p308
        $region118: #{tpu_custom_call.1} parent=63 // pred_check_branch
          %1806 = sbr.rel (%p1804) target = $region120
        $region119: #{tpu_custom_call.1} parent=63 // pred_region
          %s1808 = ssub.s32 128, 128
          %1809 = vsyncadd [#allocation9], %s1808
          %s1811 = sshll.u32 [#allocation18], 4
          %s1812 = int_to_ptr.vmem [resolvable:$true] %s1811
          %1814 = dma.vmem_to_hbm [thread:$0]  %s1812, 128, %s11, [#allocation9]
        $region120: #{tpu_custom_call.1} parent=63 // pred_fallthru
          _
        // Predicated region
        $region121: #{tpu_custom_call.1} parent=63 // pred_check
          %p1815 = pneg %p308
        $region122: #{tpu_custom_call.1} parent=63 // pred_check_branch
          %1817 = sbr.rel (%p1815) target = $region124
        $region123: #{tpu_custom_call.1} parent=63 // pred_region
          %1818 = dma.done [#allocation9], 128
        $region124: #{tpu_custom_call.1} parent=63 // pred_fallthru
          _
      $region64: #{tpu_custom_call.1} parent=5 // pred_fallthru
        _
      %p1819 = scmp.le.s32.totalorder 2, %s25
      // Predicated region
      $region125: #{tpu_custom_call.1} parent=5 // pred_check
        %p1820 = pneg %p1819
      $region126: #{tpu_custom_call.1} parent=5 // pred_check_branch
        %1822 = sbr.rel (%p1820) target = $region128
      $region127: #{tpu_custom_call.1} parent=5 // pred_region
        %s1823 = ssub.s32 %s25, 2
      $region128: #{tpu_custom_call.1} parent=5 // pred_fallthru
        _
    $region6: #{tpu_custom_call.1} parent=1 // loop_footer
      %s29 = sadd.s32 1, %s25
    $region7: #{tpu_custom_call.1} parent=1 // loop_footer_branch
      %24 = sbr.rel target = $region3
    $region8: #{tpu_custom_call.1} parent=1 // loop_exit
      _
    %1824 = vsyncpa [#allocation8], 1
    %s1825 = scalar_lea.sflag [#allocation8], 1
    %1826 = vsyncpa %s1825, 1
    %1827 = vsyncpa [#allocation11], 1
    %1828 = vsyncpa [#allocation14], 1
    %s1829 = scalar_lea.sflag [#allocation14], 1
    %1830 = vsyncpa %s1829, 1
    %1831 = vsyncpa [#allocation17], 1
    %1832 = vsyncpa [#allocation9], 1
    %s1833 = scalar_lea.sflag [#allocation9], 1
    %1834 = vsyncpa %s1833, 1

</llo_original>
